<compile_context>
chip_gen: v7x
topology: tpu7x:2x2x1
jax: 0.10.0
libtpu: 0.0.40
codegen_flags: <defaults>
</compile_context>

<pallas_src>
from functools import partial

import jax
import jax.numpy as jnp
from jax.experimental import pallas as pl
from jax.experimental.pallas import tpu as pltpu


# ----------------------------------------------------------------------------
# helpers
# ----------------------------------------------------------------------------
def _round_up(x, m):
    return (x + m - 1) // m * m


_VMEM_LIMIT = None


def _vmem_limit_bytes():
    """Generation-aware scoped-VMEM limit: ~3/4 of physical, capped at 96 MiB
    (=> ~48 MiB on v7x, 96 MiB on v5e/v6e)."""
    global _VMEM_LIMIT
    if _VMEM_LIMIT is None:
        cap = None
        try:
            cap = getattr(pltpu.get_tpu_info(), "vmem_capacity_bytes", None)
        except Exception:
            cap = None
        if not cap:
            cap = 64 * 1024 * 1024          # conservative (v7x per-core VMEM)
        _VMEM_LIMIT = int(min(96 * 1024 * 1024, (cap * 3) // 4))
    return _VMEM_LIMIT


def _gemm_layout(m_real, cout):
    """Pick lane-dense N padding and M/N tiles; keep >=2 parallel blocks when
    possible so both TensorCores stay busy on v7x."""
    if cout <= 128:
        np_ = 128
    else:
        np_ = _round_up(cout, 256)          # tn=256 feeds the full v6e/v7x MXU
    tn = 256 if np_ % 256 == 0 else 128
    nn = np_ // tn

    if m_real >= 1024:
        tm = 1024
    elif m_real >= 512:
        tm = 512
    elif m_real >= 256:
        tm = 256
    else:
        tm = _round_up(m_real, 8)
    # megacore: prefer at least 2 blocks across the parallel axes
    while tm > 256 and nn * (_round_up(m_real, tm) // tm) < 2:
        tm //= 2

    mp_ = _round_up(m_real, tm)
    nm = mp_ // tm
    return tm, tn, mp_, np_, nm, nn


def _k_layout(k_real):
    """K tiling: single full-K block when it fits (no pad copy), else 128-padded
    tiles up to 2048."""
    if k_real <= 2048:
        return k_real, k_real, 1            # kp_, tk, nk
    kp_ = _round_up(k_real, 128)
    for c in (2048, 1024, 512, 256, 128):
        if kp_ % c == 0:
            return kp_, c, kp_ // c
    return kp_, 128, kp_ // 128


# ----------------------------------------------------------------------------
# Pallas kernels
# ----------------------------------------------------------------------------
def _write_stats(stats_ref, z_f32):
    s1 = jnp.sum(z_f32, axis=0, keepdims=True)            # (1, tn)
    s2 = jnp.sum(z_f32 * z_f32, axis=0, keepdims=True)    # (1, tn)
    stats_ref[:, 0:1, :] = s1.reshape(1, 1, s1.shape[-1])
    stats_ref[:, 1:2, :] = s2.reshape(1, 1, s2.shape[-1])


def _matmul_stats_kernel_1k(p_ref, w_ref, z_ref, stats_ref):
    """Pass 1, single-K-block fast path: one MXU matmul, write bf16 z and the
    per-channel sum / sum-of-squares partials from the f32 result."""
    z = jnp.dot(p_ref[...], w_ref[...], preferred_element_type=jnp.float32)
    z_ref[...] = z.astype(z_ref.dtype)
    _write_stats(stats_ref, z)


def _matmul_stats_kernel(p_ref, w_ref, z_ref, stats_ref, acc_ref):
    """Pass 1, K-tiled: f32 VMEM accumulator with pl.when init/finalize."""
    kk = pl.program_id(2)

    @pl.when(kk == 0)
    def _():
        acc_ref[...] = jnp.zeros_like(acc_ref)

    acc_ref[...] += jnp.dot(p_ref[...], w_ref[...],
                            preferred_element_type=jnp.float32)

    @pl.when(kk == pl.num_programs(2) - 1)
    def _():
        z = acc_ref[...]
        z_ref[...] = z.astype(z_ref.dtype)
        _write_stats(stats_ref, z)


def _make_norm_kernel(apply_relu, has_residual):
    """Pass 2: y = z*scale + shift (+ residual) (+ ReLU).  bf16 I/O, f32 math."""
    if has_residual:
        def kernel(z_ref, sc_ref, sh_ref, r_ref, o_ref):
            y = (z_ref[...].astype(jnp.float32) * sc_ref[...] + sh_ref[...]
                 + r_ref[...].astype(jnp.float32))
            if apply_relu:
                y = jnp.maximum(y, 0.0)
            o_ref[...] = y.astype(o_ref.dtype)
    else:
        def kernel(z_ref, sc_ref, sh_ref, o_ref):
            y = z_ref[...].astype(jnp.float32) * sc_ref[...] + sh_ref[...]
            if apply_relu:
                y = jnp.maximum(y, 0.0)
            o_ref[...] = y.astype(o_ref.dtype)
    return kernel


# ----------------------------------------------------------------------------
# JAX glue: im2col, fused conv+bn(+res)(+relu) wrapper
# ----------------------------------------------------------------------------
def _im2col3d(x, k, stride, pad):
    """x: (N, D, H, W, C) -> (N*Do*Ho*Wo, k^3*C) patches (tap-major, C-minor)."""
    if pad:
        x = jnp.pad(x, ((0, 0), (pad, pad), (pad, pad), (pad, pad), (0, 0)))
    n, dp, hp, wp, c = x.shape
    do = (dp - k) // stride + 1
    ho = (hp - k) // stride + 1
    wo = (wp - k) // stride + 1
    cols = []
    for kd in range(k):
        for kh in range(k):
            for kw in range(k):
                cols.append(x[:, kd:kd + do * stride:stride,
                               kh:kh + ho * stride:stride,
                               kw:kw + wo * stride:stride, :])
    patches = jnp.stack(cols, axis=-2)                      # (n,do,ho,wo,k^3,c)
    return patches.reshape(n * do * ho * wo, k ** 3 * c), (n, do, ho, wo)


def conv_bn_act(x, w, gamma, beta, *, stride, pad, apply_relu,
                residual=None, eps=1e-5):
    """Conv3d(k, stride, pad, no bias) + BatchNorm3d (batch stats) +
    optional residual add + optional ReLU.  x: (N,D,H,W,Cin) bf16."""
    k = w.shape[0]
    cout = w.shape[-1]
    vmem_limit = _vmem_limit_bytes()

    # ---- glue: im2col in bf16.  TODO(synk): replace with implicit GEMM ------
    patches, (n, do, ho, wo) = _im2col3d(x.astype(jnp.bfloat16), k, stride, pad)
    m_real, k_real = patches.shape

    tm, tn, mp_, np_, nm, nn = _gemm_layout(m_real, cout)
    kp_, tk, nk = _k_layout(k_real)

    if mp_ != m_real or kp_ != k_real:
        patches = jnp.pad(patches, ((0, mp_ - m_real), (0, kp_ - k_real)))
    w_b = w.reshape(k_real, cout).astype(jnp.bfloat16)
    if kp_ != k_real or np_ != cout:
        w_b = jnp.pad(w_b, ((0, kp_ - k_real), (0, np_ - cout)))

    cost = pl.CostEstimate(
        flops=2 * mp_ * kp_ * np_, transcendentals=0,
        bytes_accessed=(nn * mp_ * kp_ * 2 + nm * kp_ * np_ * 2
                        + mp_ * np_ * 2 + nm * 2 * np_ * 4))

    z_shape = jax.ShapeDtypeStruct((mp_, np_), jnp.bfloat16)
    st_shape = jax.ShapeDtypeStruct((nm, 2, np_), jnp.float32)

    # ---- pass 1: tiled matmul + per-tile channel stats ----------------------
    if nk == 1:
        z, parts = pl.pallas_call(
            _matmul_stats_kernel_1k,
            grid=(nm, nn),
            in_specs=[
                pl.BlockSpec((tm, tk), lambda i, j: (i, 0)),
                pl.BlockSpec((tk, tn), lambda i, j: (0, j)),
            ],
            out_specs=(
                pl.BlockSpec((tm, tn), lambda i, j: (i, j)),
                pl.BlockSpec((1, 2, tn), lambda i, j: (i, 0, j)),
            ),
            out_shape=(z_shape, st_shape),
            compiler_params=pltpu.CompilerParams(
                dimension_semantics=("parallel", "parallel"),
                vmem_limit_bytes=vmem_limit),
            cost_estimate=cost,
        )(patches, w_b)
    else:
        z, parts = pl.pallas_call(
            _matmul_stats_kernel,
            grid=(nm, nn, nk),
            in_specs=[
                pl.BlockSpec((tm, tk), lambda i, j, kk: (i, kk)),
                pl.BlockSpec((tk, tn), lambda i, j, kk: (kk, j)),
            ],
            out_specs=(
                pl.BlockSpec((tm, tn), lambda i, j, kk: (i, j)),
                pl.BlockSpec((1, 2, tn), lambda i, j, kk: (i, 0, j)),
            ),
            out_shape=(z_shape, st_shape),
            scratch_shapes=[pltpu.VMEM((tm, tn), jnp.float32)],
            compiler_params=pltpu.CompilerParams(
                dimension_semantics=("parallel", "parallel", "arbitrary"),
                vmem_limit_bytes=vmem_limit),
            cost_estimate=cost,
        )(patches, w_b)

    # ---- tiny JAX finalize: batch stats -> per-channel scale / shift --------
    cnt = jnp.float32(m_real)
    s1 = jnp.sum(parts[:, 0, :], axis=0)
    s2 = jnp.sum(parts[:, 1, :], axis=0)
    mean = s1 / cnt
    var = jnp.maximum(s2 / cnt - mean * mean, 0.0)          # biased (train fwd)
    gamma_p = jnp.pad(gamma.astype(jnp.float32), (0, np_ - cout))
    beta_p = jnp.pad(beta.astype(jnp.float32), (0, np_ - cout))
    scale = gamma_p * jax.lax.rsqrt(var + eps)
    shift = beta_p - mean * scale
    scale = scale.reshape(1, np_)
    shift = shift.reshape(1, np_)

    # ---- pass 2: normalize (+ residual) (+ ReLU) on wide lane-dense blocks --
    tm2 = tm
    while tm2 < 1024 and mp_ % (2 * tm2) == 0:
        tm2 *= 2
    nm2 = mp_ // tm2

    inputs = [z, scale, shift]
    in_specs = [
        pl.BlockSpec((tm2, np_), lambda i: (i, 0)),
        pl.BlockSpec((1, np_), lambda i: (0, 0)),
        pl.BlockSpec((1, np_), lambda i: (0, 0)),
    ]
    if residual is not None:
        r = residual.reshape(m_real, cout).astype(jnp.bfloat16)
        if mp_ != m_real or np_ != cout:
            r = jnp.pad(r, ((0, mp_ - m_real), (0, np_ - cout)))
        inputs.append(r)
        in_specs.append(pl.BlockSpec((tm2, np_), lambda i: (i, 0)))

    out = pl.pallas_call(
        _make_norm_kernel(apply_relu, residual is not None),
        grid=(nm2,),
        in_specs=in_specs,
        out_specs=pl.BlockSpec((tm2, np_), lambda i: (i, 0)),
        out_shape=jax.ShapeDtypeStruct((mp_, np_), jnp.bfloat16),
        compiler_params=pltpu.CompilerParams(
            dimension_semantics=("parallel",),
            vmem_limit_bytes=vmem_limit),
    )(*inputs)

    return out[:m_real, :cout].reshape(n, do, ho, wo, cout)


# ----------------------------------------------------------------------------
# Module forward (BasicBlockNew / LayerBasic), se=False
# ----------------------------------------------------------------------------
def basic_block_forward(x, blk, stride):
    """x: (N, D, H, W, Cin) bf16 -> (N, D', H', W', Cout) bf16."""
    cin = x.shape[-1]
    cout = blk["conv1"]["w"].shape[-1]
    if cin == cout and stride == 1:
        ident = x
    elif stride == 1:
        ident = conv_bn_act(x, blk["res"]["w"], blk["res"]["gamma"],
                            blk["res"]["beta"], stride=1, pad=0,
                            apply_relu=False)
    else:
        # AvgPool3d(2,2) + 1x1 conv fused into a single 2x2x2 stride-2 conv
        # (weights replicated and divided by 8) -- exactly equivalent.
        wf = jnp.tile(blk["res"]["w"], (2, 2, 2, 1, 1)) * 0.125
        ident = conv_bn_act(x, wf, blk["res"]["gamma"], blk["res"]["beta"],
                            stride=2, pad=0, apply_relu=False)

    h = conv_bn_act(x, blk["conv1"]["w"], blk["conv1"]["gamma"],
                    blk["conv1"]["beta"], stride=stride, pad=1,
                    apply_relu=True)                       # conv1 + bn + relu
    # conv2 + bn fused with (se=Identity) residual add and final ReLU
    h = conv_bn_act(h, blk["conv2"]["w"], blk["conv2"]["gamma"],
                    blk["conv2"]["beta"], stride=1, pad=1,
                    apply_relu=True, residual=ident)
    return h


@partial(jax.jit, static_argnums=(2,))
def layer_basic_forward(x_ncdhw, params, strides):
    x = jnp.transpose(x_ncdhw, (0, 2, 3, 4, 1)).astype(jnp.bfloat16)  # -> NDHWC
    for blk, s in zip(params, strides):
        x = basic_block_forward(x, blk, s)
    return jnp.transpose(x.astype(jnp.float32), (0, 4, 1, 2, 3))      # -> NCDHW


# ----------------------------------------------------------------------------
# Deterministic parameter init (shapes follow the PyTorch __init__)
# ----------------------------------------------------------------------------
def init_conv_bn(key, cin, cout, k):
    fan_in = cin * k ** 3
    w = jax.random.normal(key, (k, k, k, cin, cout), jnp.float32)
    w = w * (2.0 / fan_in) ** 0.5
    return {"w": w,
            "gamma": jnp.ones((cout,), jnp.float32),
            "beta": jnp.zeros((cout,), jnp.float32)}


def init_layer_basic_params(key, n_stages, in_channels, out_channels, stride):
    params, strides = [], []
    for i in range(n_stages):
        ic = in_channels if i == 0 else out_channels
        s = stride if i == 0 else 1
        key, k1, k2, k3 = jax.random.split(key, 4)
        blk = {"conv1": init_conv_bn(k1, ic, out_channels, 3),
               "conv2": init_conv_bn(k2, out_channels, out_channels, 3)}
        if not (ic == out_channels and s == 1):
            blk["res"] = init_conv_bn(k3, ic, out_channels, 1)
        params.append(blk)
        strides.append(s)
    return tuple(params), tuple(strides)


# ----------------------------------------------------------------------------
if __name__ == "__main__":
    key = jax.random.PRNGKey(0)
    N, Cin, Cout, D = 2, 4, 8, 8
    n_stages, stride = 2, 2

    kx, kp = jax.random.split(key)
    x = jax.random.normal(kx, (N, Cin, D, D, D), jnp.float32)   # NCDHW
    params, strides = init_layer_basic_params(kp, n_stages, Cin, Cout, stride)

    y = layer_basic_forward(x, params, strides)
    jax.block_until_ready(y)
    assert y.shape == (N, Cout, D // stride, D // stride, D // stride), y.shape
    assert bool(jnp.all(jnp.isfinite(y)))
    print("KERNEL_OK")
</pallas_src>

<mosaic_0001>
module attributes {stable_mosaic.version = 11 : i64} {
  func.func @_matmul_stats_kernel_1k(%arg0: i32, %arg1: i32, %arg2: memref<128x108xbf16, #tpu.memory_space<vmem>>, %arg3: memref<108x128xbf16, #tpu.memory_space<vmem>>, %arg4: memref<128x128xbf16, #tpu.memory_space<vmem>>, %arg5: memref<1x2x128xf32, #tpu.memory_space<vmem>>) attributes {dimension_semantics = [#tpu.dimension_semantics<parallel>, #tpu.dimension_semantics<parallel>], iteration_bounds = array<i64: 1, 1>, scalar_prefetch = 0 : i64, scratch_operands = 0 : i64, tpu.core_type = #tpu.core_type<tc>, window_params = [{transform_indices = @transform_0, window_bounds = array<i64: 128, 108>}, {transform_indices = @transform_1, window_bounds = array<i64: 108, 128>}, {transform_indices = @transform_2, window_bounds = array<i64: 128, 128>}, {transform_indices = @transform_3, window_bounds = array<i64: 1, 2, 128>}]} {
    %c0 = arith.constant 0 : index
    %c0_0 = arith.constant 0 : index
    %0 = vector.load %arg2[%c0, %c0_0] : memref<128x108xbf16, #tpu.memory_space<vmem>>, vector<128x108xbf16>
    %c0_1 = arith.constant 0 : index
    %c0_2 = arith.constant 0 : index
    %1 = vector.load %arg3[%c0_1, %c0_2] : memref<108x128xbf16, #tpu.memory_space<vmem>>, vector<108x128xbf16>
    %cst = arith.constant dense<0.000000e+00> : vector<128x128xf32>
    %2 = tpu.matmul %0, %1, %cst {dimension_numbers = #tpu.dot_dimension_numbers<[1], [0], [0], [1], [0, 0, 1, 1], [], []>} : vector<128x108xbf16>, vector<108x128xbf16>, vector<128x128xf32> -> vector<128x128xf32>
    %3 = arith.truncf %2 : vector<128x128xf32> to vector<128x128xbf16>
    %c0_3 = arith.constant 0 : index
    %c0_4 = arith.constant 0 : index
    %4 = vector.load %arg4[%c0_3, %c0_4] : memref<128x128xbf16, #tpu.memory_space<vmem>>, vector<128x128xbf16>
    tpu.vector_store %arg4[%c0_3, %c0_4], %3 {strides = array<i32>} : memref<128x128xbf16, #tpu.memory_space<vmem>>, vector<128x128xbf16>,
    %cst_5 = arith.constant dense<0.000000e+00> : vector<128xf32>
    %5 = vector.multi_reduction <add>, %2, %cst_5 [0] : vector<128x128xf32> to vector<128xf32>
    %6 = vector.shape_cast %5 : vector<128xf32> to vector<1x128xf32>
    %7 = arith.mulf %2, %2 : vector<128x128xf32>
    %cst_6 = arith.constant dense<0.000000e+00> : vector<128xf32>
    %8 = vector.multi_reduction <add>, %7, %cst_6 [0] : vector<128x128xf32> to vector<128xf32>
    %9 = vector.shape_cast %8 : vector<128xf32> to vector<1x128xf32>
    %10 = vector.shape_cast %6 : vector<1x128xf32> to vector<1x1x128xf32>
    %c0_7 = arith.constant 0 : index
    %c0_8 = arith.constant 0 : index
    %c0_9 = arith.constant 0 : index
    %11 = vector.load %arg5[%c0_7, %c0_8, %c0_9] : memref<1x2x128xf32, #tpu.memory_space<vmem>>, vector<1x1x128xf32>
    tpu.vector_store %arg5[%c0_7, %c0_8, %c0_9], %10 {strides = array<i32>} : memref<1x2x128xf32, #tpu.memory_space<vmem>>, vector<1x1x128xf32>,
    %12 = vector.shape_cast %9 : vector<1x128xf32> to vector<1x1x128xf32>
    %c0_10 = arith.constant 0 : index
    %c1 = arith.constant 1 : index
    %c0_11 = arith.constant 0 : index
    %13 = vector.load %arg5[%c0_10, %c1, %c0_11] : memref<1x2x128xf32, #tpu.memory_space<vmem>>, vector<1x1x128xf32>
    tpu.vector_store %arg5[%c0_10, %c1, %c0_11], %12 {strides = array<i32>} : memref<1x2x128xf32, #tpu.memory_space<vmem>>, vector<1x1x128xf32>,
    return
  }
  func.func @transform_0(%arg0: i32, %arg1: i32) -> (i32, i32) {
    %c0_i32 = arith.constant 0 : i32
    %c0_i32_0 = arith.constant 0 : i32
    return %arg0, %c0_i32 : i32, i32
  }
  func.func @transform_1(%arg0: i32, %arg1: i32) -> (i32, i32) {
    %c0_i32 = arith.constant 0 : i32
    %c0_i32_0 = arith.constant 0 : i32
    return %c0_i32, %arg1 : i32, i32
  }
  func.func @transform_2(%arg0: i32, %arg1: i32) -> (i32, i32) {
    %c0_i32 = arith.constant 0 : i32
    return %arg0, %arg1 : i32, i32
  }
  func.func @transform_3(%arg0: i32, %arg1: i32) -> (i32, i32, i32) {
    %c0_i32 = arith.constant 0 : i32
    %c0_i32_0 = arith.constant 0 : i32
    return %arg0, %c0_i32, %arg1 : i32, i32, i32
  }
}

module attributes {stable_mosaic.version = 11 : i64} {
  func.func @kernel(%arg0: i32, %arg1: memref<128x128xbf16, #tpu.memory_space<vmem>>, %arg2: memref<1x128xf32, #tpu.memory_space<vmem>>, %arg3: memref<1x128xf32, #tpu.memory_space<vmem>>, %arg4: memref<128x128xbf16, #tpu.memory_space<vmem>>) attributes {dimension_semantics = [#tpu.dimension_semantics<parallel>], iteration_bounds = array<i64: 1>, scalar_prefetch = 0 : i64, scratch_operands = 0 : i64, tpu.core_type = #tpu.core_type<tc>, window_params = [{transform_indices = @transform_0, window_bounds = array<i64: 128, 128>}, {pipeline_mode = #tpu.pipeline_mode<synchronous>, transform_indices = @transform_1, window_bounds = array<i64: 1, 128>}, {pipeline_mode = #tpu.pipeline_mode<synchronous>, transform_indices = @transform_2, window_bounds = array<i64: 1, 128>}, {transform_indices = @transform_3, window_bounds = array<i64: 128, 128>}]} {
    %c0 = arith.constant 0 : index
    %c0_0 = arith.constant 0 : index
    %0 = vector.load %arg1[%c0, %c0_0] : memref<128x128xbf16, #tpu.memory_space<vmem>>, vector<128x128xbf16>
    %1 = arith.extf %0 : vector<128x128xbf16> to vector<128x128xf32>
    %c0_1 = arith.constant 0 : index
    %c0_2 = arith.constant 0 : index
    %2 = vector.load %arg2[%c0_1, %c0_2] : memref<1x128xf32, #tpu.memory_space<vmem>>, vector<1x128xf32>
    %3 = vector.broadcast %2 : vector<1x128xf32> to vector<128x128xf32>
    %4 = arith.mulf %1, %3 : vector<128x128xf32>
    %c0_3 = arith.constant 0 : index
    %c0_4 = arith.constant 0 : index
    %5 = vector.load %arg3[%c0_3, %c0_4] : memref<1x128xf32, #tpu.memory_space<vmem>>, vector<1x128xf32>
    %6 = vector.broadcast %5 : vector<1x128xf32> to vector<128x128xf32>
    %7 = arith.addf %4, %6 : vector<128x128xf32>
    %cst = arith.constant 0.000000e+00 : f32
    %8 = vector.broadcast %cst : f32 to vector<128x128xf32>
    %9 = arith.maximumf %7, %8 : vector<128x128xf32>
    %10 = arith.truncf %9 : vector<128x128xf32> to vector<128x128xbf16>
    %c0_5 = arith.constant 0 : index
    %c0_6 = arith.constant 0 : index
    %11 = vector.load %arg4[%c0_5, %c0_6] : memref<128x128xbf16, #tpu.memory_space<vmem>>, vector<128x128xbf16>
    tpu.vector_store %arg4[%c0_5, %c0_6], %10 {strides = array<i32>} : memref<128x128xbf16, #tpu.memory_space<vmem>>, vector<128x128xbf16>,
    return
  }
  func.func @transform_0(%arg0: i32) -> (i32, i32) {
    %c0_i32 = arith.constant 0 : i32
    %c0_i32_0 = arith.constant 0 : i32
    return %arg0, %c0_i32 : i32, i32
  }
  func.func @transform_1(%arg0: i32) -> (i32, i32) {
    %c0_i32 = arith.constant 0 : i32
    %c0_i32_0 = arith.constant 0 : i32
    %c0_i32_1 = arith.constant 0 : i32
    return %c0_i32, %c0_i32_0 : i32, i32
  }
  func.func @transform_2(%arg0: i32) -> (i32, i32) {
    %c0_i32 = arith.constant 0 : i32
    %c0_i32_0 = arith.constant 0 : i32
    %c0_i32_1 = arith.constant 0 : i32
    return %c0_i32, %c0_i32_0 : i32, i32
  }
  func.func @transform_3(%arg0: i32) -> (i32, i32) {
    %c0_i32 = arith.constant 0 : i32
    %c0_i32_0 = arith.constant 0 : i32
    return %arg0, %c0_i32 : i32, i32
  }
}

module attributes {stable_mosaic.version = 11 : i64} {
  func.func @_matmul_stats_kernel_1k(%arg0: i32, %arg1: i32, %arg2: memref<128x216xbf16, #tpu.memory_space<vmem>>, %arg3: memref<216x128xbf16, #tpu.memory_space<vmem>>, %arg4: memref<128x128xbf16, #tpu.memory_space<vmem>>, %arg5: memref<1x2x128xf32, #tpu.memory_space<vmem>>) attributes {dimension_semantics = [#tpu.dimension_semantics<parallel>, #tpu.dimension_semantics<parallel>], iteration_bounds = array<i64: 1, 1>, scalar_prefetch = 0 : i64, scratch_operands = 0 : i64, tpu.core_type = #tpu.core_type<tc>, window_params = [{transform_indices = @transform_0, window_bounds = array<i64: 128, 216>}, {transform_indices = @transform_1, window_bounds = array<i64: 216, 128>}, {transform_indices = @transform_2, window_bounds = array<i64: 128, 128>}, {transform_indices = @transform_3, window_bounds = array<i64: 1, 2, 128>}]} {
    %c0 = arith.constant 0 : index
    %c0_0 = arith.constant 0 : index
    %0 = vector.load %arg2[%c0, %c0_0] : memref<128x216xbf16, #tpu.memory_space<vmem>>, vector<128x216xbf16>
    %c0_1 = arith.constant 0 : index
    %c0_2 = arith.constant 0 : index
    %1 = vector.load %arg3[%c0_1, %c0_2] : memref<216x128xbf16, #tpu.memory_space<vmem>>, vector<216x128xbf16>
    %cst = arith.constant dense<0.000000e+00> : vector<128x128xf32>
    %2 = tpu.matmul %0, %1, %cst {dimension_numbers = #tpu.dot_dimension_numbers<[1], [0], [0], [1], [0, 0, 1, 1], [], []>} : vector<128x216xbf16>, vector<216x128xbf16>, vector<128x128xf32> -> vector<128x128xf32>
    %3 = arith.truncf %2 : vector<128x128xf32> to vector<128x128xbf16>
    %c0_3 = arith.constant 0 : index
    %c0_4 = arith.constant 0 : index
    %4 = vector.load %arg4[%c0_3, %c0_4] : memref<128x128xbf16, #tpu.memory_space<vmem>>, vector<128x128xbf16>
    tpu.vector_store %arg4[%c0_3, %c0_4], %3 {strides = array<i32>} : memref<128x128xbf16, #tpu.memory_space<vmem>>, vector<128x128xbf16>,
    %cst_5 = arith.constant dense<0.000000e+00> : vector<128xf32>
    %5 = vector.multi_reduction <add>, %2, %cst_5 [0] : vector<128x128xf32> to vector<128xf32>
    %6 = vector.shape_cast %5 : vector<128xf32> to vector<1x128xf32>
    %7 = arith.mulf %2, %2 : vector<128x128xf32>
    %cst_6 = arith.constant dense<0.000000e+00> : vector<128xf32>
    %8 = vector.multi_reduction <add>, %7, %cst_6 [0] : vector<128x128xf32> to vector<128xf32>
    %9 = vector.shape_cast %8 : vector<128xf32> to vector<1x128xf32>
    %10 = vector.shape_cast %6 : vector<1x128xf32> to vector<1x1x128xf32>
    %c0_7 = arith.constant 0 : index
    %c0_8 = arith.constant 0 : index
    %c0_9 = arith.constant 0 : index
    %11 = vector.load %arg5[%c0_7, %c0_8, %c0_9] : memref<1x2x128xf32, #tpu.memory_space<vmem>>, vector<1x1x128xf32>
    tpu.vector_store %arg5[%c0_7, %c0_8, %c0_9], %10 {strides = array<i32>} : memref<1x2x128xf32, #tpu.memory_space<vmem>>, vector<1x1x128xf32>,
    %12 = vector.shape_cast %9 : vector<1x128xf32> to vector<1x1x128xf32>
    %c0_10 = arith.constant 0 : index
    %c1 = arith.constant 1 : index
    %c0_11 = arith.constant 0 : index
    %13 = vector.load %arg5[%c0_10, %c1, %c0_11] : memref<1x2x128xf32, #tpu.memory_space<vmem>>, vector<1x1x128xf32>
    tpu.vector_store %arg5[%c0_10, %c1, %c0_11], %12 {strides = array<i32>} : memref<1x2x128xf32, #tpu.memory_space<vmem>>, vector<1x1x128xf32>,
    return
  }
  func.func @transform_0(%arg0: i32, %arg1: i32) -> (i32, i32) {
    %c0_i32 = arith.constant 0 : i32
    %c0_i32_0 = arith.constant 0 : i32
    return %arg0, %c0_i32 : i32, i32
  }
  func.func @transform_1(%arg0: i32, %arg1: i32) -> (i32, i32) {
    %c0_i32 = arith.constant 0 : i32
    %c0_i32_0 = arith.constant 0 : i32
    return %c0_i32, %arg1 : i32, i32
  }
  func.func @transform_2(%arg0: i32, %arg1: i32) -> (i32, i32) {
    %c0_i32 = arith.constant 0 : i32
    return %arg0, %arg1 : i32, i32
  }
  func.func @transform_3(%arg0: i32, %arg1: i32) -> (i32, i32, i32) {
    %c0_i32 = arith.constant 0 : i32
    %c0_i32_0 = arith.constant 0 : i32
    return %arg0, %c0_i32, %arg1 : i32, i32, i32
  }
}

module attributes {stable_mosaic.version = 11 : i64} {
  func.func @_matmul_stats_kernel_1k(%arg0: i32, %arg1: i32, %arg2: memref<128x32xbf16, #tpu.memory_space<vmem>>, %arg3: memref<32x128xbf16, #tpu.memory_space<vmem>>, %arg4: memref<128x128xbf16, #tpu.memory_space<vmem>>, %arg5: memref<1x2x128xf32, #tpu.memory_space<vmem>>) attributes {dimension_semantics = [#tpu.dimension_semantics<parallel>, #tpu.dimension_semantics<parallel>], iteration_bounds = array<i64: 1, 1>, scalar_prefetch = 0 : i64, scratch_operands = 0 : i64, tpu.core_type = #tpu.core_type<tc>, window_params = [{transform_indices = @transform_0, window_bounds = array<i64: 128, 32>}, {transform_indices = @transform_1, window_bounds = array<i64: 32, 128>}, {transform_indices = @transform_2, window_bounds = array<i64: 128, 128>}, {transform_indices = @transform_3, window_bounds = array<i64: 1, 2, 128>}]} {
    %c0 = arith.constant 0 : index
    %c0_0 = arith.constant 0 : index
    %0 = vector.load %arg2[%c0, %c0_0] : memref<128x32xbf16, #tpu.memory_space<vmem>>, vector<128x32xbf16>
    %c0_1 = arith.constant 0 : index
    %c0_2 = arith.constant 0 : index
    %1 = vector.load %arg3[%c0_1, %c0_2] : memref<32x128xbf16, #tpu.memory_space<vmem>>, vector<32x128xbf16>
    %cst = arith.constant dense<0.000000e+00> : vector<128x128xf32>
    %2 = tpu.matmul %0, %1, %cst {dimension_numbers = #tpu.dot_dimension_numbers<[1], [0], [0], [1], [0, 0, 1, 1], [], []>} : vector<128x32xbf16>, vector<32x128xbf16>, vector<128x128xf32> -> vector<128x128xf32>
    %3 = arith.truncf %2 : vector<128x128xf32> to vector<128x128xbf16>
    %c0_3 = arith.constant 0 : index
    %c0_4 = arith.constant 0 : index
    %4 = vector.load %arg4[%c0_3, %c0_4] : memref<128x128xbf16, #tpu.memory_space<vmem>>, vector<128x128xbf16>
    tpu.vector_store %arg4[%c0_3, %c0_4], %3 {strides = array<i32>} : memref<128x128xbf16, #tpu.memory_space<vmem>>, vector<128x128xbf16>,
    %cst_5 = arith.constant dense<0.000000e+00> : vector<128xf32>
    %5 = vector.multi_reduction <add>, %2, %cst_5 [0] : vector<128x128xf32> to vector<128xf32>
    %6 = vector.shape_cast %5 : vector<128xf32> to vector<1x128xf32>
    %7 = arith.mulf %2, %2 : vector<128x128xf32>
    %cst_6 = arith.constant dense<0.000000e+00> : vector<128xf32>
    %8 = vector.multi_reduction <add>, %7, %cst_6 [0] : vector<128x128xf32> to vector<128xf32>
    %9 = vector.shape_cast %8 : vector<128xf32> to vector<1x128xf32>
    %10 = vector.shape_cast %6 : vector<1x128xf32> to vector<1x1x128xf32>
    %c0_7 = arith.constant 0 : index
    %c0_8 = arith.constant 0 : index
    %c0_9 = arith.constant 0 : index
    %11 = vector.load %arg5[%c0_7, %c0_8, %c0_9] : memref<1x2x128xf32, #tpu.memory_space<vmem>>, vector<1x1x128xf32>
    tpu.vector_store %arg5[%c0_7, %c0_8, %c0_9], %10 {strides = array<i32>} : memref<1x2x128xf32, #tpu.memory_space<vmem>>, vector<1x1x128xf32>,
    %12 = vector.shape_cast %9 : vector<1x128xf32> to vector<1x1x128xf32>
    %c0_10 = arith.constant 0 : index
    %c1 = arith.constant 1 : index
    %c0_11 = arith.constant 0 : index
    %13 = vector.load %arg5[%c0_10, %c1, %c0_11] : memref<1x2x128xf32, #tpu.memory_space<vmem>>, vector<1x1x128xf32>
    tpu.vector_store %arg5[%c0_10, %c1, %c0_11], %12 {strides = array<i32>} : memref<1x2x128xf32, #tpu.memory_space<vmem>>, vector<1x1x128xf32>,
    return
  }
  func.func @transform_0(%arg0: i32, %arg1: i32) -> (i32, i32) {
    %c0_i32 = arith.constant 0 : i32
    %c0_i32_0 = arith.constant 0 : i32
    return %arg0, %c0_i32 : i32, i32
  }
  func.func @transform_1(%arg0: i32, %arg1: i32) -> (i32, i32) {
    %c0_i32 = arith.constant 0 : i32
    %c0_i32_0 = arith.constant 0 : i32
    return %c0_i32, %arg1 : i32, i32
  }
  func.func @transform_2(%arg0: i32, %arg1: i32) -> (i32, i32) {
    %c0_i32 = arith.constant 0 : i32
    return %arg0, %arg1 : i32, i32
  }
  func.func @transform_3(%arg0: i32, %arg1: i32) -> (i32, i32, i32) {
    %c0_i32 = arith.constant 0 : i32
    %c0_i32_0 = arith.constant 0 : i32
    return %arg0, %c0_i32, %arg1 : i32, i32, i32
  }
}

module attributes {stable_mosaic.version = 11 : i64} {
  func.func @kernel(%arg0: i32, %arg1: memref<128x128xbf16, #tpu.memory_space<vmem>>, %arg2: memref<1x128xf32, #tpu.memory_space<vmem>>, %arg3: memref<1x128xf32, #tpu.memory_space<vmem>>, %arg4: memref<128x128xbf16, #tpu.memory_space<vmem>>) attributes {dimension_semantics = [#tpu.dimension_semantics<parallel>], iteration_bounds = array<i64: 1>, scalar_prefetch = 0 : i64, scratch_operands = 0 : i64, tpu.core_type = #tpu.core_type<tc>, window_params = [{transform_indices = @transform_0, window_bounds = array<i64: 128, 128>}, {pipeline_mode = #tpu.pipeline_mode<synchronous>, transform_indices = @transform_1, window_bounds = array<i64: 1, 128>}, {pipeline_mode = #tpu.pipeline_mode<synchronous>, transform_indices = @transform_2, window_bounds = array<i64: 1, 128>}, {transform_indices = @transform_3, window_bounds = array<i64: 128, 128>}]} {
    %c0 = arith.constant 0 : index
    %c0_0 = arith.constant 0 : index
    %0 = vector.load %arg1[%c0, %c0_0] : memref<128x128xbf16, #tpu.memory_space<vmem>>, vector<128x128xbf16>
    %1 = arith.extf %0 : vector<128x128xbf16> to vector<128x128xf32>
    %c0_1 = arith.constant 0 : index
    %c0_2 = arith.constant 0 : index
    %2 = vector.load %arg2[%c0_1, %c0_2] : memref<1x128xf32, #tpu.memory_space<vmem>>, vector<1x128xf32>
    %3 = vector.broadcast %2 : vector<1x128xf32> to vector<128x128xf32>
    %4 = arith.mulf %1, %3 : vector<128x128xf32>
    %c0_3 = arith.constant 0 : index
    %c0_4 = arith.constant 0 : index
    %5 = vector.load %arg3[%c0_3, %c0_4] : memref<1x128xf32, #tpu.memory_space<vmem>>, vector<1x128xf32>
    %6 = vector.broadcast %5 : vector<1x128xf32> to vector<128x128xf32>
    %7 = arith.addf %4, %6 : vector<128x128xf32>
    %8 = arith.truncf %7 : vector<128x128xf32> to vector<128x128xbf16>
    %c0_5 = arith.constant 0 : index
    %c0_6 = arith.constant 0 : index
    %9 = vector.load %arg4[%c0_5, %c0_6] : memref<128x128xbf16, #tpu.memory_space<vmem>>, vector<128x128xbf16>
    tpu.vector_store %arg4[%c0_5, %c0_6], %8 {strides = array<i32>} : memref<128x128xbf16, #tpu.memory_space<vmem>>, vector<128x128xbf16>,
    return
  }
  func.func @transform_0(%arg0: i32) -> (i32, i32) {
    %c0_i32 = arith.constant 0 : i32
    %c0_i32_0 = arith.constant 0 : i32
    return %arg0, %c0_i32 : i32, i32
  }
  func.func @transform_1(%arg0: i32) -> (i32, i32) {
    %c0_i32 = arith.constant 0 : i32
    %c0_i32_0 = arith.constant 0 : i32
    %c0_i32_1 = arith.constant 0 : i32
    return %c0_i32, %c0_i32_0 : i32, i32
  }
  func.func @transform_2(%arg0: i32) -> (i32, i32) {
    %c0_i32 = arith.constant 0 : i32
    %c0_i32_0 = arith.constant 0 : i32
    %c0_i32_1 = arith.constant 0 : i32
    return %c0_i32, %c0_i32_0 : i32, i32
  }
  func.func @transform_3(%arg0: i32) -> (i32, i32) {
    %c0_i32 = arith.constant 0 : i32
    %c0_i32_0 = arith.constant 0 : i32
    return %arg0, %c0_i32 : i32, i32
  }
}

module attributes {stable_mosaic.version = 11 : i64} {
  func.func @kernel(%arg0: i32, %arg1: memref<128x128xbf16, #tpu.memory_space<vmem>>, %arg2: memref<1x128xf32, #tpu.memory_space<vmem>>, %arg3: memref<1x128xf32, #tpu.memory_space<vmem>>, %arg4: memref<128x128xbf16, #tpu.memory_space<vmem>>, %arg5: memref<128x128xbf16, #tpu.memory_space<vmem>>) attributes {dimension_semantics = [#tpu.dimension_semantics<parallel>], iteration_bounds = array<i64: 1>, scalar_prefetch = 0 : i64, scratch_operands = 0 : i64, tpu.core_type = #tpu.core_type<tc>, window_params = [{transform_indices = @transform_0, window_bounds = array<i64: 128, 128>}, {pipeline_mode = #tpu.pipeline_mode<synchronous>, transform_indices = @transform_1, window_bounds = array<i64: 1, 128>}, {pipeline_mode = #tpu.pipeline_mode<synchronous>, transform_indices = @transform_2, window_bounds = array<i64: 1, 128>}, {transform_indices = @transform_3, window_bounds = array<i64: 128, 128>}, {transform_indices = @transform_4, window_bounds = array<i64: 128, 128>}]} {
    %c0 = arith.constant 0 : index
    %c0_0 = arith.constant 0 : index
    %0 = vector.load %arg1[%c0, %c0_0] : memref<128x128xbf16, #tpu.memory_space<vmem>>, vector<128x128xbf16>
    %1 = arith.extf %0 : vector<128x128xbf16> to vector<128x128xf32>
    %c0_1 = arith.constant 0 : index
    %c0_2 = arith.constant 0 : index
    %2 = vector.load %arg2[%c0_1, %c0_2] : memref<1x128xf32, #tpu.memory_space<vmem>>, vector<1x128xf32>
    %3 = vector.broadcast %2 : vector<1x128xf32> to vector<128x128xf32>
    %4 = arith.mulf %1, %3 : vector<128x128xf32>
    %c0_3 = arith.constant 0 : index
    %c0_4 = arith.constant 0 : index
    %5 = vector.load %arg3[%c0_3, %c0_4] : memref<1x128xf32, #tpu.memory_space<vmem>>, vector<1x128xf32>
    %6 = vector.broadcast %5 : vector<1x128xf32> to vector<128x128xf32>
    %7 = arith.addf %4, %6 : vector<128x128xf32>
    %c0_5 = arith.constant 0 : index
    %c0_6 = arith.constant 0 : index
    %8 = vector.load %arg4[%c0_5, %c0_6] : memref<128x128xbf16, #tpu.memory_space<vmem>>, vector<128x128xbf16>
    %9 = arith.extf %8 : vector<128x128xbf16> to vector<128x128xf32>
    %10 = arith.addf %7, %9 : vector<128x128xf32>
    %cst = arith.constant 0.000000e+00 : f32
    %11 = vector.broadcast %cst : f32 to vector<128x128xf32>
    %12 = arith.maximumf %10, %11 : vector<128x128xf32>
    %13 = arith.truncf %12 : vector<128x128xf32> to vector<128x128xbf16>
    %c0_7 = arith.constant 0 : index
    %c0_8 = arith.constant 0 : index
    %14 = vector.load %arg5[%c0_7, %c0_8] : memref<128x128xbf16, #tpu.memory_space<vmem>>, vector<128x128xbf16>
    tpu.vector_store %arg5[%c0_7, %c0_8], %13 {strides = array<i32>} : memref<128x128xbf16, #tpu.memory_space<vmem>>, vector<128x128xbf16>,
    return
  }
  func.func @transform_0(%arg0: i32) -> (i32, i32) {
    %c0_i32 = arith.constant 0 : i32
    %c0_i32_0 = arith.constant 0 : i32
    return %arg0, %c0_i32 : i32, i32
  }
  func.func @transform_1(%arg0: i32) -> (i32, i32) {
    %c0_i32 = arith.constant 0 : i32
    %c0_i32_0 = arith.constant 0 : i32
    %c0_i32_1 = arith.constant 0 : i32
    return %c0_i32, %c0_i32_0 : i32, i32
  }
  func.func @transform_2(%arg0: i32) -> (i32, i32) {
    %c0_i32 = arith.constant 0 : i32
    %c0_i32_0 = arith.constant 0 : i32
    %c0_i32_1 = arith.constant 0 : i32
    return %c0_i32, %c0_i32_0 : i32, i32
  }
  func.func @transform_3(%arg0: i32) -> (i32, i32) {
    %c0_i32 = arith.constant 0 : i32
    %c0_i32_0 = arith.constant 0 : i32
    return %arg0, %c0_i32 : i32, i32
  }
  func.func @transform_4(%arg0: i32) -> (i32, i32) {
    %c0_i32 = arith.constant 0 : i32
    %c0_i32_0 = arith.constant 0 : i32
    return %arg0, %c0_i32 : i32, i32
  }
}

</mosaic_0001>

<llo_original>
// kernel: layer_basic_forward.13
$region0: #{layer_basic_forward.13}
  #allocation0 [shape = 'u32[]', space=smem, size = 0x4, offset = 0x4, fixed_abs, tag = 'smem constant byte address 0x4 - core index']
  #allocation1 [shape = 'u32[144,128]{1,0:T(1,128)}', space=vmem, size = 0x12000, scoped, tag = 'internal scratch']
  %s0 = inlined_call_operand.vmem [shape: bf16[128,128], index: 0, kind: input, shape index: {}]
  %s1 = inlined_call_operand.vmem [shape: f32[1,128], index: 1, kind: input, shape index: {}]
  %s2 = inlined_call_operand.vmem [shape: f32[1,128], index: 2, kind: input, shape index: {}]
  %s3 = inlined_call_operand.vmem [shape: bf16[128,128], index: 3, kind: output, shape index: {}]
  %s4 = sld [smem:[#allocation0]]
  $region22: #{layer_basic_forward.13} parent=0
    _
  %s6 = ssub.s32 1, %s4
  %s7 = scalar_select 0, %s6, %s4
  // Predicated region
  $region2: #{layer_basic_forward.13} parent=0 // pred_check
    _
  $region3: #{layer_basic_forward.13} parent=0 // pred_check_branch
    %9 = sbr.rel (0) target = $region5
  $region4: #{layer_basic_forward.13} parent=0 // pred_region
    _
  $region5: #{layer_basic_forward.13} parent=0 // pred_fallthru
    _
  // Predicated region
  $region6: #{layer_basic_forward.13} parent=0 // pred_check
    _
  $region7: #{layer_basic_forward.13} parent=0 // pred_check_branch
    %11 = sbr.rel (0) target = $region9
  $region8: #{layer_basic_forward.13} parent=0 // pred_region
    _
  $region9: #{layer_basic_forward.13} parent=0 // pred_fallthru
    _
  // Predicated region
  $region10: #{layer_basic_forward.13} parent=0 // pred_check
    _
  $region11: #{layer_basic_forward.13} parent=0 // pred_check_branch
    %13 = sbr.rel (0) target = $region13
  $region12: #{layer_basic_forward.13} parent=0 // pred_region
    _
  $region13: #{layer_basic_forward.13} parent=0 // pred_fallthru
    _
  %v14 = vld [vmem:[%s0] sm:$0xf]
  %v15 = vld [vmem:[%s0 + $0x4] sm:$0xf]
  %v16 = vld [vmem:[%s0 + $0x8] sm:$0xf]
  %v17 = vld [vmem:[%s0 + $0xc] sm:$0xf]
  %v18 = vld [vmem:[%s0 + $0x10] sm:$0xf]
  %v19 = vld [vmem:[%s0 + $0x14] sm:$0xf]
  %v20 = vld [vmem:[%s0 + $0x18] sm:$0xf]
  %v21 = vld [vmem:[%s0 + $0x1c] sm:$0xf]
  %v22 = vld [vmem:[%s0 + $0x20] sm:$0xf]
  %v23 = vld [vmem:[%s0 + $0x24] sm:$0xf]
  %v24 = vld [vmem:[%s0 + $0x28] sm:$0xf]
  %v25 = vld [vmem:[%s0 + $0x2c] sm:$0xf]
  %v26 = vld [vmem:[%s0 + $0x30] sm:$0xf]
  %v27 = vld [vmem:[%s0 + $0x34] sm:$0xf]
  %v28 = vld [vmem:[%s0 + $0x38] sm:$0xf]
  %v29 = vld [vmem:[%s0 + $0x3c] sm:$0xf]
  %v30 = vunpack.c.l.bf16 %v14
  %v31 = vunpack.c.l.bf16 %v15
  %v32 = vunpack.c.l.bf16 %v16
  %v33 = vunpack.c.l.bf16 %v17
  %v34 = vunpack.c.l.bf16 %v18
  %v35 = vunpack.c.l.bf16 %v19
  %v36 = vunpack.c.l.bf16 %v20
  %v37 = vunpack.c.l.bf16 %v21
  %v38 = vunpack.c.l.bf16 %v22
  %v39 = vunpack.c.l.bf16 %v23
  %v40 = vunpack.c.l.bf16 %v24
  %v41 = vunpack.c.l.bf16 %v25
  %v42 = vunpack.c.l.bf16 %v26
  %v43 = vunpack.c.l.bf16 %v27
  %v44 = vunpack.c.l.bf16 %v28
  %v45 = vunpack.c.l.bf16 %v29
  %v46 = vld [vmem:[%s1] sm:$0x1]
  %v48 = vlaneseq
  %v49 = vshrl.u32 %v48, 7
  %v50 = vsub.s32 0, %v49
  %v51 = vrot.slane %v46, %v50
  %v53 = vmul.f32 %v30, %v51
  %v54 = vmul.f32 %v31, %v51
  %v55 = vmul.f32 %v32, %v51
  %v56 = vmul.f32 %v33, %v51
  %v57 = vmul.f32 %v34, %v51
  %v58 = vmul.f32 %v35, %v51
  %v59 = vmul.f32 %v36, %v51
  %v60 = vmul.f32 %v37, %v51
  %v61 = vmul.f32 %v38, %v51
  %v62 = vmul.f32 %v39, %v51
  %v63 = vmul.f32 %v40, %v51
  %v64 = vmul.f32 %v41, %v51
  %v65 = vmul.f32 %v42, %v51
  %v66 = vmul.f32 %v43, %v51
  %v67 = vmul.f32 %v44, %v51
  %v68 = vmul.f32 %v45, %v51
  %v69 = vld [vmem:[%s2] sm:$0x1]
  %v71 = vlaneseq
  %v72 = vshrl.u32 %v71, 7
  %v73 = vsub.s32 0, %v72
  %v74 = vrot.slane %v69, %v73
  %v76 = vadd.f32 %v53, %v74
  %v77 = vadd.f32 %v54, %v74
  %v78 = vadd.f32 %v55, %v74
  %v79 = vadd.f32 %v56, %v74
  %v80 = vadd.f32 %v57, %v74
  %v81 = vadd.f32 %v58, %v74
  %v82 = vadd.f32 %v59, %v74
  %v83 = vadd.f32 %v60, %v74
  %v84 = vadd.f32 %v61, %v74
  %v85 = vadd.f32 %v62, %v74
  %v86 = vadd.f32 %v63, %v74
  %v87 = vadd.f32 %v64, %v74
  %v88 = vadd.f32 %v65, %v74
  %v89 = vadd.f32 %v66, %v74
  %v90 = vadd.f32 %v67, %v74
  %v91 = vadd.f32 %v68, %v74
  %v92 = vmax.f32 %v76, 0.0
  %v93 = vmax.f32 %v77, 0.0
  %v94 = vmax.f32 %v78, 0.0
  %v95 = vmax.f32 %v79, 0.0
  %v96 = vmax.f32 %v80, 0.0
  %v97 = vmax.f32 %v81, 0.0
  %v98 = vmax.f32 %v82, 0.0
  %v99 = vmax.f32 %v83, 0.0
  %v100 = vmax.f32 %v84, 0.0
  %v101 = vmax.f32 %v85, 0.0
  %v102 = vmax.f32 %v86, 0.0
  %v103 = vmax.f32 %v87, 0.0
  %v104 = vmax.f32 %v88, 0.0
  %v105 = vmax.f32 %v89, 0.0
  %v106 = vmax.f32 %v90, 0.0
  %v107 = vmax.f32 %v91, 0.0
  %v108 = vpack.c.bf16 %v93, %v92
  %v109 = vpack.c.bf16 %v95, %v94
  %v110 = vpack.c.bf16 %v97, %v96
  %v111 = vpack.c.bf16 %v99, %v98
  %v112 = vpack.c.bf16 %v101, %v100
  %v113 = vpack.c.bf16 %v103, %v102
  %v114 = vpack.c.bf16 %v105, %v104
  %v115 = vpack.c.bf16 %v107, %v106
  %v124 = vunpack.c.l.b16 %v108
  %v125 = vunpack.c.h.b16 %v108
  %v126 = vunpack.c.l.b16 %v109
  %v127 = vunpack.c.h.b16 %v109
  %v128 = vunpack.c.l.b16 %v110
  %v129 = vunpack.c.h.b16 %v110
  %v130 = vunpack.c.l.b16 %v111
  %v131 = vunpack.c.h.b16 %v111
  %v132 = vunpack.c.l.b16 %v112
  %v133 = vunpack.c.h.b16 %v112
  %v134 = vunpack.c.l.b16 %v113
  %v135 = vunpack.c.h.b16 %v113
  %v136 = vunpack.c.l.b16 %v114
  %v137 = vunpack.c.h.b16 %v114
  %v138 = vunpack.c.l.b16 %v115
  %v139 = vunpack.c.h.b16 %v115
  %v140 = vpack.c.b16 %v124, %v124
  %v141 = vpack.c.b16 %v125, %v125
  %v142 = vpack.c.b16 %v126, %v126
  %v143 = vpack.c.b16 %v127, %v127
  %v144 = vpack.c.b16 %v128, %v128
  %v145 = vpack.c.b16 %v129, %v129
  %v146 = vpack.c.b16 %v130, %v130
  %v147 = vpack.c.b16 %v131, %v131
  %v148 = vpack.c.b16 %v132, %v132
  %v149 = vpack.c.b16 %v133, %v133
  %v150 = vpack.c.b16 %v134, %v134
  %v151 = vpack.c.b16 %v135, %v135
  %v152 = vpack.c.b16 %v136, %v136
  %v153 = vpack.c.b16 %v137, %v137
  %v154 = vpack.c.b16 %v138, %v138
  %v155 = vpack.c.b16 %v139, %v139
  %172 = vst [vmem:[%s3] sm:$0xf] %v140
  %173 = vst [vmem:[%s3 + $0x4] sm:$0xf] %v141
  %174 = vst [vmem:[%s3 + $0x8] sm:$0xf] %v142
  %175 = vst [vmem:[%s3 + $0xc] sm:$0xf] %v143
  %176 = vst [vmem:[%s3 + $0x10] sm:$0xf] %v144
  %177 = vst [vmem:[%s3 + $0x14] sm:$0xf] %v145
  %178 = vst [vmem:[%s3 + $0x18] sm:$0xf] %v146
  %179 = vst [vmem:[%s3 + $0x1c] sm:$0xf] %v147
  %180 = vst [vmem:[%s3 + $0x20] sm:$0xf] %v148
  %181 = vst [vmem:[%s3 + $0x24] sm:$0xf] %v149
  %182 = vst [vmem:[%s3 + $0x28] sm:$0xf] %v150
  %183 = vst [vmem:[%s3 + $0x2c] sm:$0xf] %v151
  %184 = vst [vmem:[%s3 + $0x30] sm:$0xf] %v152
  %185 = vst [vmem:[%s3 + $0x34] sm:$0xf] %v153
  %186 = vst [vmem:[%s3 + $0x38] sm:$0xf] %v154
  %187 = vst [vmem:[%s3 + $0x3c] sm:$0xf] %v155
  // Predicated region
  $region14: #{layer_basic_forward.13} parent=0 // pred_check
    _
  $region15: #{layer_basic_forward.13} parent=0 // pred_check_branch
    %189 = sbr.rel (0) target = $region17
  $region16: #{layer_basic_forward.13} parent=0 // pred_region
    _
  $region17: #{layer_basic_forward.13} parent=0 // pred_fallthru
    _
  // Predicated region
  $region18: #{layer_basic_forward.13} parent=0 // pred_check
    _
  $region19: #{layer_basic_forward.13} parent=0 // pred_check_branch
    %191 = sbr.rel (0) target = $region21
  $region20: #{layer_basic_forward.13} parent=0 // pred_region
    _
  $region21: #{layer_basic_forward.13} parent=0 // pred_fallthru
    _

// kernel: layer_basic_forward.12
$region0: #{layer_basic_forward.12}
  #allocation0 [shape = 'u32[]', space=smem, size = 0x4, offset = 0x4, fixed_abs, tag = 'smem constant byte address 0x4 - core index']
  #allocation1 [shape = 'u32[144,128]{1,0:T(1,128)}', space=vmem, size = 0x12000, scoped, tag = 'internal scratch']
  %s0 = inlined_call_operand.vmem [shape: bf16[128,108], index: 0, kind: input, shape index: {}]
  %s1 = inlined_call_operand.vmem [shape: bf16[108,128], index: 1, kind: input, shape index: {}]
  %s2 = inlined_call_operand.vmem [shape: bf16[128,128], index: 2, kind: output, shape index: {0}]
  %s3 = inlined_call_operand.vmem [shape: f32[1,2,128], index: 3, kind: output, shape index: {1}]
  %4 = xla_tuple %s2, %s3
  %s5 = sld [smem:[#allocation0]]
  $region26: #{layer_basic_forward.12} parent=0
    _
  %s7 = ssub.s32 1, %s5
  %s8 = scalar_select 0, %s7, %s5
  // Predicated region
  $region2: #{layer_basic_forward.12} parent=0 // pred_check
    _
  $region3: #{layer_basic_forward.12} parent=0 // pred_check_branch
    %10 = sbr.rel (0) target = $region5
  $region4: #{layer_basic_forward.12} parent=0 // pred_region
    _
  $region5: #{layer_basic_forward.12} parent=0 // pred_fallthru
    _
  // Predicated region
  $region6: #{layer_basic_forward.12} parent=0 // pred_check
    _
  $region7: #{layer_basic_forward.12} parent=0 // pred_check_branch
    %12 = sbr.rel (0) target = $region9
  $region8: #{layer_basic_forward.12} parent=0 // pred_region
    _
  $region9: #{layer_basic_forward.12} parent=0 // pred_fallthru
    _
  %v14 = vld [vmem:[%s0] sm:$0xf]
  %v15 = vld [vmem:[%s0 + $0x4] sm:$0xf]
  %v16 = vld [vmem:[%s0 + $0x8] sm:$0xf]
  %v17 = vld [vmem:[%s0 + $0xc] sm:$0xf]
  %v18 = vld [vmem:[%s0 + $0x10] sm:$0xf]
  %v19 = vld [vmem:[%s0 + $0x14] sm:$0xf]
  %v20 = vld [vmem:[%s0 + $0x18] sm:$0xf]
  %v21 = vld [vmem:[%s0 + $0x1c] sm:$0xf]
  %v22 = vld [vmem:[%s0 + $0x20] sm:$0xf]
  %v23 = vld [vmem:[%s0 + $0x24] sm:$0xf]
  %v24 = vld [vmem:[%s0 + $0x28] sm:$0xf]
  %v25 = vld [vmem:[%s0 + $0x2c] sm:$0xf]
  %v26 = vld [vmem:[%s0 + $0x30] sm:$0xf]
  %v27 = vld [vmem:[%s0 + $0x34] sm:$0xf]
  %v28 = vld [vmem:[%s0 + $0x38] sm:$0xf]
  %v29 = vld [vmem:[%s0 + $0x3c] sm:$0xf]
  %v30 = vld [vmem:[%s1] sm:$0xf]
  %v31 = vld [vmem:[%s1 + $0x4] sm:$0xf]
  %v32 = vld [vmem:[%s1 + $0x8] sm:$0xf]
  %v33 = vld [vmem:[%s1 + $0xc] sm:$0xf]
  %v34 = vld [vmem:[%s1 + $0x10] sm:$0xf]
  %v35 = vld [vmem:[%s1 + $0x14] sm:$0xf]
  %v36 = vld [vmem:[%s1 + $0x18] sm:$0xf]
  %v37 = vld [vmem:[%s1 + $0x1c] sm:$0xf]
  %v38 = vld [vmem:[%s1 + $0x20] sm:$0xf]
  %v39 = vld [vmem:[%s1 + $0x24] sm:$0xf]
  %v40 = vld [vmem:[%s1 + $0x28] sm:$0xf]
  %v41 = vld [vmem:[%s1 + $0x2c] sm:$0xf]
  %v42 = vld [vmem:[%s1 + $0x30] sm:$0xf]
  %v43 = vld [vmem:[%s1 + $0x34] sm:$0x3]
  %v60 = vunpack.c.l.b16 %v14
  %v61 = vunpack.c.l.b16 %v15
  %v62 = vunpack.c.l.b16 %v16
  %v63 = vunpack.c.l.b16 %v17
  %v64 = vunpack.c.l.b16 %v18
  %v65 = vunpack.c.l.b16 %v19
  %v66 = vunpack.c.l.b16 %v20
  %v67 = vunpack.c.l.b16 %v21
  %v68 = vunpack.c.l.b16 %v22
  %v69 = vunpack.c.l.b16 %v23
  %v70 = vunpack.c.l.b16 %v24
  %v71 = vunpack.c.l.b16 %v25
  %v72 = vunpack.c.l.b16 %v26
  %v73 = vunpack.c.l.b16 %v27
  %v74 = vunpack.c.l.b16 %v28
  %v75 = vunpack.c.l.b16 %v29
  %v76 = vpack.c.b16 %v61, %v60
  %v77 = vpack.c.b16 %v63, %v62
  %v78 = vpack.c.b16 %v65, %v64
  %v79 = vpack.c.b16 %v67, %v66
  %v80 = vpack.c.b16 %v69, %v68
  %v81 = vpack.c.b16 %v71, %v70
  %v82 = vpack.c.b16 %v73, %v72
  %v83 = vpack.c.b16 %v75, %v74
  %v98 = vunpack.c.l.b16 %v30
  %v99 = vunpack.c.l.b16 %v31
  %v100 = vunpack.c.l.b16 %v32
  %v101 = vunpack.c.l.b16 %v33
  %v102 = vunpack.c.l.b16 %v34
  %v103 = vunpack.c.l.b16 %v35
  %v104 = vunpack.c.l.b16 %v36
  %v105 = vunpack.c.l.b16 %v37
  %v106 = vunpack.c.l.b16 %v38
  %v107 = vunpack.c.l.b16 %v39
  %v108 = vunpack.c.l.b16 %v40
  %v109 = vunpack.c.l.b16 %v41
  %v110 = vunpack.c.l.b16 %v42
  %v111 = vunpack.c.l.b16 %v43
  %v112 = vpack.c.b16 %v99, %v98
  %v113 = vpack.c.b16 %v101, %v100
  %v114 = vpack.c.b16 %v103, %v102
  %v115 = vpack.c.b16 %v105, %v104
  %v116 = vpack.c.b16 %v107, %v106
  %v117 = vpack.c.b16 %v109, %v108
  %v118 = vpack.c.b16 %v111, %v110
  %vm125 = vcmask 883712
  %v127 = vsel %vm125, %v76, 0
  %v130 = vsel %vm125, %v77, 0
  %v133 = vsel %vm125, %v78, 0
  %v136 = vsel %vm125, %v79, 0
  %v139 = vsel %vm125, %v80, 0
  %v142 = vsel %vm125, %v81, 0
  %v145 = vsel %vm125, %v82, 0
  %v148 = vsel %vm125, %v83, 0
  %vm150 = vcmask 1045504
  %v152 = vsel %vm150, %v118, 0
  %154 = vmatprep.subr.bf16.mxu0 0
  %155 = vmatpush1.bf16.msra.mxu0 %v112
  %156 = vmatprep.subr.bf16.mxu0 0
  %157 = vmatpush1.bf16.msra.mxu0 %v113
  %158 = vmatprep.subr.bf16.mxu0 0
  %159 = vmatpush1.bf16.msra.mxu0 %v114
  %160 = vmatprep.subr.bf16.mxu0 0
  %161 = vmatpush1.bf16.msra.mxu0 %v115
  %162 = vmatprep.subr.bf16.mxu0 0
  %163 = vmatpush1.bf16.msra.mxu0 %v116
  %164 = vmatprep.subr.bf16.mxu0 0
  %165 = vmatpush1.bf16.msra.mxu0 %v117
  %166 = vmatprep.subr.bf16.mxu0 0
  %167 = vmatpush1.bf16.msra.mxu0 %v152
  %168 = vmatprep.subr.bf16.mxu0 0
  %169 = vmatpush1.bf16.msra.mxu0 0
  %170 = vmatprep.subr.bf16.mxu0 0
  %171 = vmatpush1.bf16.msra.mxu0 0
  %172 = vmatprep.subr.bf16.mxu0 0
  %173 = vmatpush1.bf16.msra.mxu0 0
  %174 = vmatprep.subr.bf16.mxu0 0
  %175 = vmatpush1.bf16.msra.mxu0 0
  %176 = vmatprep.subr.bf16.mxu0 0
  %177 = vmatpush1.bf16.msra.mxu0 0
  %178 = vmatprep.subr.bf16.mxu0 0
  %179 = vmatpush1.bf16.msra.mxu0 0
  %180 = vmatprep.subr.bf16.mxu0 0
  %181 = vmatpush1.bf16.msra.mxu0 0
  %182 = vmatprep.subr.bf16.mxu0 0
  %183 = vmatpush1.bf16.msra.mxu0 0
  %184 = vmatprep.subr.bf16.mxu0 0
  %185 = vmatpush1.bf16.msra.mxu0 0
  %186 = vmatprep.mubr.bf16.mxu0 0
  %187 = vmatmul.mubr.bf16.gmra.mrb[0].mxu0 %v127
  %v188 = vpop.f32.mrb[0].mxu0
  %v189 = vadd.f32 0.0, %v188
  %v190 = vpop.f32.mrb[0].mxu0
  %v191 = vpop.f32.mrb[0].mxu0
  %v192 = vadd.f32 0.0, %v191
  %v193 = vpop.f32.mrb[0].mxu0
  %194 = vmatprep.mubr.bf16.mxu0 0
  %195 = vmatmul.mubr.bf16.gmra.mrb[0].mxu0 %v130
  %v196 = vpop.f32.mrb[0].mxu0
  %v197 = vadd.f32 0.0, %v196
  %v198 = vpop.f32.mrb[0].mxu0
  %v199 = vpop.f32.mrb[0].mxu0
  %v200 = vadd.f32 0.0, %v199
  %v201 = vpop.f32.mrb[0].mxu0
  %202 = vmatprep.mubr.bf16.mxu0 0
  %203 = vmatmul.mubr.bf16.gmra.mrb[0].mxu0 %v133
  %v204 = vpop.f32.mrb[0].mxu0
  %v205 = vadd.f32 0.0, %v204
  %v206 = vpop.f32.mrb[0].mxu0
  %v207 = vpop.f32.mrb[0].mxu0
  %v208 = vadd.f32 0.0, %v207
  %v209 = vpop.f32.mrb[0].mxu0
  %210 = vmatprep.mubr.bf16.mxu0 0
  %211 = vmatmul.mubr.bf16.gmra.mrb[0].mxu0 %v136
  %v212 = vpop.f32.mrb[0].mxu0
  %v213 = vadd.f32 0.0, %v212
  %v214 = vpop.f32.mrb[0].mxu0
  %v215 = vpop.f32.mrb[0].mxu0
  %v216 = vadd.f32 0.0, %v215
  %v217 = vpop.f32.mrb[0].mxu0
  %218 = vmatprep.mubr.bf16.mxu0 0
  %219 = vmatmul.mubr.bf16.gmra.mrb[0].mxu0 %v139
  %v220 = vpop.f32.mrb[0].mxu0
  %v221 = vadd.f32 0.0, %v220
  %v222 = vpop.f32.mrb[0].mxu0
  %v223 = vpop.f32.mrb[0].mxu0
  %v224 = vadd.f32 0.0, %v223
  %v225 = vpop.f32.mrb[0].mxu0
  %226 = vmatprep.mubr.bf16.mxu0 0
  %227 = vmatmul.mubr.bf16.gmra.mrb[0].mxu0 %v142
  %v228 = vpop.f32.mrb[0].mxu0
  %v229 = vadd.f32 0.0, %v228
  %v230 = vpop.f32.mrb[0].mxu0
  %v231 = vpop.f32.mrb[0].mxu0
  %v232 = vadd.f32 0.0, %v231
  %v233 = vpop.f32.mrb[0].mxu0
  %234 = vmatprep.mubr.bf16.mxu0 0
  %235 = vmatmul.mubr.bf16.gmra.mrb[0].mxu0 %v145
  %v236 = vpop.f32.mrb[0].mxu0
  %v237 = vadd.f32 0.0, %v236
  %v238 = vpop.f32.mrb[0].mxu0
  %v239 = vpop.f32.mrb[0].mxu0
  %v240 = vadd.f32 0.0, %v239
  %v241 = vpop.f32.mrb[0].mxu0
  %242 = vmatprep.mubr.bf16.mxu0 0
  %243 = vmatmul.mubr.bf16.gmra.mrb[0].mxu0 %v148
  %v244 = vpop.f32.mrb[0].mxu0
  %v245 = vadd.f32 0.0, %v244
  %v246 = vpop.f32.mrb[0].mxu0
  %v247 = vpop.f32.mrb[0].mxu0
  %v248 = vadd.f32 0.0, %v247
  %v249 = vpop.f32.mrb[0].mxu0
  %250 = vdwg.mxu0
  %v251 = vpack.c.bf16 %v192, %v189
  %v252 = vpack.c.bf16 %v200, %v197
  %v253 = vpack.c.bf16 %v208, %v205
  %v254 = vpack.c.bf16 %v216, %v213
  %v255 = vpack.c.bf16 %v224, %v221
  %v256 = vpack.c.bf16 %v232, %v229
  %v257 = vpack.c.bf16 %v240, %v237
  %v258 = vpack.c.bf16 %v248, %v245
  %v267 = vunpack.c.l.b16 %v251
  %v268 = vunpack.c.h.b16 %v251
  %v269 = vunpack.c.l.b16 %v252
  %v270 = vunpack.c.h.b16 %v252
  %v271 = vunpack.c.l.b16 %v253
  %v272 = vunpack.c.h.b16 %v253
  %v273 = vunpack.c.l.b16 %v254
  %v274 = vunpack.c.h.b16 %v254
  %v275 = vunpack.c.l.b16 %v255
  %v276 = vunpack.c.h.b16 %v255
  %v277 = vunpack.c.l.b16 %v256
  %v278 = vunpack.c.h.b16 %v256
  %v279 = vunpack.c.l.b16 %v257
  %v280 = vunpack.c.h.b16 %v257
  %v281 = vunpack.c.l.b16 %v258
  %v282 = vunpack.c.h.b16 %v258
  %v283 = vpack.c.b16 %v267, %v267
  %v284 = vpack.c.b16 %v268, %v268
  %v285 = vpack.c.b16 %v269, %v269
  %v286 = vpack.c.b16 %v270, %v270
  %v287 = vpack.c.b16 %v271, %v271
  %v288 = vpack.c.b16 %v272, %v272
  %v289 = vpack.c.b16 %v273, %v273
  %v290 = vpack.c.b16 %v274, %v274
  %v291 = vpack.c.b16 %v275, %v275
  %v292 = vpack.c.b16 %v276, %v276
  %v293 = vpack.c.b16 %v277, %v277
  %v294 = vpack.c.b16 %v278, %v278
  %v295 = vpack.c.b16 %v279, %v279
  %v296 = vpack.c.b16 %v280, %v280
  %v297 = vpack.c.b16 %v281, %v281
  %v298 = vpack.c.b16 %v282, %v282
  %315 = vst [vmem:[%s2] sm:$0xf] %v283
  %316 = vst [vmem:[%s2 + $0x4] sm:$0xf] %v284
  %317 = vst [vmem:[%s2 + $0x8] sm:$0xf] %v285
  %318 = vst [vmem:[%s2 + $0xc] sm:$0xf] %v286
  %319 = vst [vmem:[%s2 + $0x10] sm:$0xf] %v287
  %320 = vst [vmem:[%s2 + $0x14] sm:$0xf] %v288
  %321 = vst [vmem:[%s2 + $0x18] sm:$0xf] %v289
  %322 = vst [vmem:[%s2 + $0x1c] sm:$0xf] %v290
  %323 = vst [vmem:[%s2 + $0x20] sm:$0xf] %v291
  %324 = vst [vmem:[%s2 + $0x24] sm:$0xf] %v292
  %325 = vst [vmem:[%s2 + $0x28] sm:$0xf] %v293
  %326 = vst [vmem:[%s2 + $0x2c] sm:$0xf] %v294
  %327 = vst [vmem:[%s2 + $0x30] sm:$0xf] %v295
  %328 = vst [vmem:[%s2 + $0x34] sm:$0xf] %v296
  %329 = vst [vmem:[%s2 + $0x38] sm:$0xf] %v297
  %330 = vst [vmem:[%s2 + $0x3c] sm:$0xf] %v298
  %v331 = vadd.f32 %v189, %v192
  %v332 = vadd.f32 %v331, %v197
  %v333 = vadd.f32 %v332, %v200
  %v334 = vadd.f32 %v333, %v205
  %v335 = vadd.f32 %v334, %v208
  %v336 = vadd.f32 %v335, %v213
  %v337 = vadd.f32 %v336, %v216
  %v338 = vadd.f32 %v337, %v221
  %v339 = vadd.f32 %v338, %v224
  %v340 = vadd.f32 %v339, %v229
  %v341 = vadd.f32 %v340, %v232
  %v342 = vadd.f32 %v341, %v237
  %v343 = vadd.f32 %v342, %v240
  %v344 = vadd.f32 %v343, %v245
  %v345 = vadd.f32 %v344, %v248
  %v346 = vrot.slane %v345, 4
  %v347 = vadd.f32 %v345, %v346
  %v348 = vrot.slane %v347, 2
  %v349 = vadd.f32 %v347, %v348
  %v350 = vrot.slane %v349, 1
  %v351 = vadd.f32 %v349, %v350
  %v352 = vmul.f32 %v189, %v189
  %v353 = vmul.f32 %v192, %v192
  %v354 = vmul.f32 %v197, %v197
  %v355 = vmul.f32 %v200, %v200
  %v356 = vmul.f32 %v205, %v205
  %v357 = vmul.f32 %v208, %v208
  %v358 = vmul.f32 %v213, %v213
  %v359 = vmul.f32 %v216, %v216
  %v360 = vmul.f32 %v221, %v221
  %v361 = vmul.f32 %v224, %v224
  %v362 = vmul.f32 %v229, %v229
  %v363 = vmul.f32 %v232, %v232
  %v364 = vmul.f32 %v237, %v237
  %v365 = vmul.f32 %v240, %v240
  %v366 = vmul.f32 %v245, %v245
  %v367 = vmul.f32 %v248, %v248
  %v368 = vadd.f32 %v352, %v353
  %v369 = vadd.f32 %v368, %v354
  %v370 = vadd.f32 %v369, %v355
  %v371 = vadd.f32 %v370, %v356
  %v372 = vadd.f32 %v371, %v357
  %v373 = vadd.f32 %v372, %v358
  %v374 = vadd.f32 %v373, %v359
  %v375 = vadd.f32 %v374, %v360
  %v376 = vadd.f32 %v375, %v361
  %v377 = vadd.f32 %v376, %v362
  %v378 = vadd.f32 %v377, %v363
  %v379 = vadd.f32 %v378, %v364
  %v380 = vadd.f32 %v379, %v365
  %v381 = vadd.f32 %v380, %v366
  %v382 = vadd.f32 %v381, %v367
  %v383 = vrot.slane %v382, 4
  %v384 = vadd.f32 %v382, %v383
  %v385 = vrot.slane %v384, 2
  %v386 = vadd.f32 %v384, %v385
  %v387 = vrot.slane %v386, 1
  %v388 = vadd.f32 %v386, %v387
  %389 = vst [vmem:[%s3] sm:$0x1] %v351
  %390 = vst [vmem:[%s3 + $0x1] sm:$0x1] %v388
  // Predicated region
  $region10: #{layer_basic_forward.12} parent=0 // pred_check
    _
  $region11: #{layer_basic_forward.12} parent=0 // pred_check_branch
    %392 = sbr.rel (0) target = $region13
  $region12: #{layer_basic_forward.12} parent=0 // pred_region
    _
  $region13: #{layer_basic_forward.12} parent=0 // pred_fallthru
    _
  // Predicated region
  $region14: #{layer_basic_forward.12} parent=0 // pred_check
    _
  $region15: #{layer_basic_forward.12} parent=0 // pred_check_branch
    %394 = sbr.rel (0) target = $region17
  $region16: #{layer_basic_forward.12} parent=0 // pred_region
    _
  $region17: #{layer_basic_forward.12} parent=0 // pred_fallthru
    _
  // Predicated region
  $region18: #{layer_basic_forward.12} parent=0 // pred_check
    _
  $region19: #{layer_basic_forward.12} parent=0 // pred_check_branch
    %396 = sbr.rel (0) target = $region21
  $region20: #{layer_basic_forward.12} parent=0 // pred_region
    _
  $region21: #{layer_basic_forward.12} parent=0 // pred_fallthru
    _
  // Predicated region
  $region22: #{layer_basic_forward.12} parent=0 // pred_check
    _
  $region23: #{layer_basic_forward.12} parent=0 // pred_check_branch
    %398 = sbr.rel (0) target = $region25
  $region24: #{layer_basic_forward.12} parent=0 // pred_region
    _
  $region25: #{layer_basic_forward.12} parent=0 // pred_fallthru
    _

// kernel: layer_basic_forward.14
$region0: #{layer_basic_forward.14}
  #allocation0 [shape = 'u32[]', space=smem, size = 0x4, offset = 0x4, fixed_abs, tag = 'smem constant byte address 0x4 - core index']
  #allocation1 [shape = 'u32[144,128]{1,0:T(1,128)}', space=vmem, size = 0x12000, scoped, tag = 'internal scratch']
  %s0 = inlined_call_operand.vmem [shape: bf16[128,216], index: 0, kind: input, shape index: {}]
  %s1 = inlined_call_operand.vmem [shape: bf16[216,128], index: 1, kind: input, shape index: {}]
  %s2 = inlined_call_operand.vmem [shape: bf16[128,128], index: 2, kind: output, shape index: {0}]
  %s3 = inlined_call_operand.vmem [shape: f32[1,2,128], index: 3, kind: output, shape index: {1}]
  %4 = xla_tuple %s2, %s3
  %s5 = sld [smem:[#allocation0]]
  $region26: #{layer_basic_forward.14} parent=0
    _
  %s7 = ssub.s32 1, %s5
  %s8 = scalar_select 0, %s7, %s5
  // Predicated region
  $region2: #{layer_basic_forward.14} parent=0 // pred_check
    _
  $region3: #{layer_basic_forward.14} parent=0 // pred_check_branch
    %10 = sbr.rel (0) target = $region5
  $region4: #{layer_basic_forward.14} parent=0 // pred_region
    _
  $region5: #{layer_basic_forward.14} parent=0 // pred_fallthru
    _
  // Predicated region
  $region6: #{layer_basic_forward.14} parent=0 // pred_check
    _
  $region7: #{layer_basic_forward.14} parent=0 // pred_check_branch
    %12 = sbr.rel (0) target = $region9
  $region8: #{layer_basic_forward.14} parent=0 // pred_region
    _
  $region9: #{layer_basic_forward.14} parent=0 // pred_fallthru
    _
  %v14 = vld [vmem:[%s0] sm:$0xff]
  %v15 = vld [vmem:[%s0 + $0x8] sm:$0xff]
  %v16 = vld [vmem:[%s0 + $0x10] sm:$0xff]
  %v17 = vld [vmem:[%s0 + $0x18] sm:$0xff]
  %v18 = vld [vmem:[%s0 + $0x20] sm:$0xff]
  %v19 = vld [vmem:[%s0 + $0x28] sm:$0xff]
  %v20 = vld [vmem:[%s0 + $0x30] sm:$0xff]
  %v21 = vld [vmem:[%s0 + $0x38] sm:$0xff]
  %v22 = vld [vmem:[%s0 + $0x40] sm:$0xff]
  %v23 = vld [vmem:[%s0 + $0x48] sm:$0xff]
  %v24 = vld [vmem:[%s0 + $0x50] sm:$0xff]
  %v25 = vld [vmem:[%s0 + $0x58] sm:$0xff]
  %v26 = vld [vmem:[%s0 + $0x60] sm:$0xff]
  %v27 = vld [vmem:[%s0 + $0x68] sm:$0xff]
  %v28 = vld [vmem:[%s0 + $0x70] sm:$0xff]
  %v29 = vld [vmem:[%s0 + $0x78] sm:$0xff]
  %v30 = vld [vmem:[%s1] sm:$0xf]
  %v31 = vld [vmem:[%s1 + $0x4] sm:$0xf]
  %v32 = vld [vmem:[%s1 + $0x8] sm:$0xf]
  %v33 = vld [vmem:[%s1 + $0xc] sm:$0xf]
  %v34 = vld [vmem:[%s1 + $0x10] sm:$0xf]
  %v35 = vld [vmem:[%s1 + $0x14] sm:$0xf]
  %v36 = vld [vmem:[%s1 + $0x18] sm:$0xf]
  %v37 = vld [vmem:[%s1 + $0x1c] sm:$0xf]
  %v38 = vld [vmem:[%s1 + $0x20] sm:$0xf]
  %v39 = vld [vmem:[%s1 + $0x24] sm:$0xf]
  %v40 = vld [vmem:[%s1 + $0x28] sm:$0xf]
  %v41 = vld [vmem:[%s1 + $0x2c] sm:$0xf]
  %v42 = vld [vmem:[%s1 + $0x30] sm:$0xf]
  %v43 = vld [vmem:[%s1 + $0x34] sm:$0xf]
  %v44 = vld [vmem:[%s1 + $0x38] sm:$0xf]
  %v45 = vld [vmem:[%s1 + $0x3c] sm:$0xf]
  %v46 = vld [vmem:[%s1 + $0x40] sm:$0xf]
  %v47 = vld [vmem:[%s1 + $0x44] sm:$0xf]
  %v48 = vld [vmem:[%s1 + $0x48] sm:$0xf]
  %v49 = vld [vmem:[%s1 + $0x4c] sm:$0xf]
  %v50 = vld [vmem:[%s1 + $0x50] sm:$0xf]
  %v51 = vld [vmem:[%s1 + $0x54] sm:$0xf]
  %v52 = vld [vmem:[%s1 + $0x58] sm:$0xf]
  %v53 = vld [vmem:[%s1 + $0x5c] sm:$0xf]
  %v54 = vld [vmem:[%s1 + $0x60] sm:$0xf]
  %v55 = vld [vmem:[%s1 + $0x64] sm:$0xf]
  %v56 = vld [vmem:[%s1 + $0x68] sm:$0xf]
  %v73 = vunpack.c.l.b16 %v14
  %v74 = vunpack.c.h.b16 %v14
  %v75 = vunpack.c.l.b16 %v15
  %v76 = vunpack.c.h.b16 %v15
  %v77 = vunpack.c.l.b16 %v16
  %v78 = vunpack.c.h.b16 %v16
  %v79 = vunpack.c.l.b16 %v17
  %v80 = vunpack.c.h.b16 %v17
  %v81 = vunpack.c.l.b16 %v18
  %v82 = vunpack.c.h.b16 %v18
  %v83 = vunpack.c.l.b16 %v19
  %v84 = vunpack.c.h.b16 %v19
  %v85 = vunpack.c.l.b16 %v20
  %v86 = vunpack.c.h.b16 %v20
  %v87 = vunpack.c.l.b16 %v21
  %v88 = vunpack.c.h.b16 %v21
  %v89 = vunpack.c.l.b16 %v22
  %v90 = vunpack.c.h.b16 %v22
  %v91 = vunpack.c.l.b16 %v23
  %v92 = vunpack.c.h.b16 %v23
  %v93 = vunpack.c.l.b16 %v24
  %v94 = vunpack.c.h.b16 %v24
  %v95 = vunpack.c.l.b16 %v25
  %v96 = vunpack.c.h.b16 %v25
  %v97 = vunpack.c.l.b16 %v26
  %v98 = vunpack.c.h.b16 %v26
  %v99 = vunpack.c.l.b16 %v27
  %v100 = vunpack.c.h.b16 %v27
  %v101 = vunpack.c.l.b16 %v28
  %v102 = vunpack.c.h.b16 %v28
  %v103 = vunpack.c.l.b16 %v29
  %v104 = vunpack.c.h.b16 %v29
  %v105 = vpack.c.b16 %v75, %v73
  %v106 = vpack.c.b16 %v76, %v74
  %v107 = vpack.c.b16 %v79, %v77
  %v108 = vpack.c.b16 %v80, %v78
  %v109 = vpack.c.b16 %v83, %v81
  %v110 = vpack.c.b16 %v84, %v82
  %v111 = vpack.c.b16 %v87, %v85
  %v112 = vpack.c.b16 %v88, %v86
  %v113 = vpack.c.b16 %v91, %v89
  %v114 = vpack.c.b16 %v92, %v90
  %v115 = vpack.c.b16 %v95, %v93
  %v116 = vpack.c.b16 %v96, %v94
  %v117 = vpack.c.b16 %v99, %v97
  %v118 = vpack.c.b16 %v100, %v98
  %v119 = vpack.c.b16 %v103, %v101
  %v120 = vpack.c.b16 %v104, %v102
  %v156 = vunpack.c.l.b16 %v30
  %v157 = vunpack.c.l.b16 %v31
  %v158 = vunpack.c.l.b16 %v32
  %v159 = vunpack.c.l.b16 %v33
  %v160 = vunpack.c.l.b16 %v34
  %v161 = vunpack.c.l.b16 %v35
  %v162 = vunpack.c.l.b16 %v36
  %v163 = vunpack.c.l.b16 %v37
  %v164 = vunpack.c.l.b16 %v38
  %v165 = vunpack.c.l.b16 %v39
  %v166 = vunpack.c.l.b16 %v40
  %v167 = vunpack.c.l.b16 %v41
  %v168 = vunpack.c.l.b16 %v42
  %v169 = vunpack.c.l.b16 %v43
  %v170 = vunpack.c.l.b16 %v44
  %v171 = vunpack.c.l.b16 %v45
  %v172 = vunpack.c.l.b16 %v46
  %v173 = vunpack.c.l.b16 %v47
  %v174 = vunpack.c.l.b16 %v48
  %v175 = vunpack.c.l.b16 %v49
  %v176 = vunpack.c.l.b16 %v50
  %v177 = vunpack.c.l.b16 %v51
  %v178 = vunpack.c.l.b16 %v52
  %v179 = vunpack.c.l.b16 %v53
  %v180 = vunpack.c.l.b16 %v54
  %v181 = vunpack.c.l.b16 %v55
  %v182 = vunpack.c.l.b16 %v56
  %v183 = vpack.c.b16 %v157, %v156
  %v184 = vpack.c.b16 %v159, %v158
  %v185 = vpack.c.b16 %v161, %v160
  %v186 = vpack.c.b16 %v163, %v162
  %v187 = vpack.c.b16 %v165, %v164
  %v188 = vpack.c.b16 %v167, %v166
  %v189 = vpack.c.b16 %v169, %v168
  %v190 = vpack.c.b16 %v171, %v170
  %v191 = vpack.c.b16 %v173, %v172
  %v192 = vpack.c.b16 %v175, %v174
  %v193 = vpack.c.b16 %v177, %v176
  %v194 = vpack.c.b16 %v179, %v178
  %v195 = vpack.c.b16 %v181, %v180
  %v196 = vpack.c.b16 %v182, %v182
  %vm210 = vcmask 719872
  %v212 = vsel %vm210, %v106, 0
  %v215 = vsel %vm210, %v108, 0
  %v218 = vsel %vm210, %v110, 0
  %v221 = vsel %vm210, %v112, 0
  %v224 = vsel %vm210, %v114, 0
  %v227 = vsel %vm210, %v116, 0
  %v230 = vsel %vm210, %v118, 0
  %v233 = vsel %vm210, %v120, 0
  %vm235 = vcmask 1043456
  %v237 = vsel %vm235, %v196, 0
  %239 = vmatprep.subr.bf16.mxu0 0
  %240 = vmatpush1.bf16.msra.mxu0 %v183
  %241 = vmatprep.subr.bf16.mxu0 0
  %242 = vmatpush1.bf16.msra.mxu0 %v184
  %243 = vmatprep.subr.bf16.mxu0 0
  %244 = vmatpush1.bf16.msra.mxu0 %v185
  %245 = vmatprep.subr.bf16.mxu0 0
  %246 = vmatpush1.bf16.msra.mxu0 %v186
  %247 = vmatprep.subr.bf16.mxu0 0
  %248 = vmatpush1.bf16.msra.mxu0 %v187
  %249 = vmatprep.subr.bf16.mxu0 0
  %250 = vmatpush1.bf16.msra.mxu0 %v188
  %251 = vmatprep.subr.bf16.mxu0 0
  %252 = vmatpush1.bf16.msra.mxu0 %v189
  %253 = vmatprep.subr.bf16.mxu0 0
  %254 = vmatpush1.bf16.msra.mxu0 %v190
  %255 = vmatprep.subr.bf16.mxu0 0
  %256 = vmatpush1.bf16.msra.mxu0 %v191
  %257 = vmatprep.subr.bf16.mxu0 0
  %258 = vmatpush1.bf16.msra.mxu0 %v192
  %259 = vmatprep.subr.bf16.mxu0 0
  %260 = vmatpush1.bf16.msra.mxu0 %v193
  %261 = vmatprep.subr.bf16.mxu0 0
  %262 = vmatpush1.bf16.msra.mxu0 %v194
  %263 = vmatprep.subr.bf16.mxu0 0
  %264 = vmatpush1.bf16.msra.mxu0 %v195
  %265 = vmatprep.subr.bf16.mxu0 0
  %266 = vmatpush1.bf16.msra.mxu0 %v237
  %267 = vmatprep.subr.bf16.mxu0 0
  %268 = vmatpush1.bf16.msra.mxu0 0
  %269 = vmatprep.subr.bf16.mxu0 0
  %270 = vmatpush1.bf16.msra.mxu0 0
  %271 = vmatprep.mubr.bf16.mxu0 %v212
  %272 = vmatmul.mubr.bf16.gmra.mrb[0].mxu0 %v105
  %v273 = vpop.f32.mrb[0].mxu0
  %v274 = vadd.f32 0.0, %v273
  %v275 = vpop.f32.mrb[0].mxu0
  %v276 = vpop.f32.mrb[0].mxu0
  %v277 = vadd.f32 0.0, %v276
  %v278 = vpop.f32.mrb[0].mxu0
  %279 = vmatprep.mubr.bf16.mxu0 %v215
  %280 = vmatmul.mubr.bf16.gmra.mrb[0].mxu0 %v107
  %v281 = vpop.f32.mrb[0].mxu0
  %v282 = vadd.f32 0.0, %v281
  %v283 = vpop.f32.mrb[0].mxu0
  %v284 = vpop.f32.mrb[0].mxu0
  %v285 = vadd.f32 0.0, %v284
  %v286 = vpop.f32.mrb[0].mxu0
  %287 = vmatprep.mubr.bf16.mxu0 %v218
  %288 = vmatmul.mubr.bf16.gmra.mrb[0].mxu0 %v109
  %v289 = vpop.f32.mrb[0].mxu0
  %v290 = vadd.f32 0.0, %v289
  %v291 = vpop.f32.mrb[0].mxu0
  %v292 = vpop.f32.mrb[0].mxu0
  %v293 = vadd.f32 0.0, %v292
  %v294 = vpop.f32.mrb[0].mxu0
  %295 = vmatprep.mubr.bf16.mxu0 %v221
  %296 = vmatmul.mubr.bf16.gmra.mrb[0].mxu0 %v111
  %v297 = vpop.f32.mrb[0].mxu0
  %v298 = vadd.f32 0.0, %v297
  %v299 = vpop.f32.mrb[0].mxu0
  %v300 = vpop.f32.mrb[0].mxu0
  %v301 = vadd.f32 0.0, %v300
  %v302 = vpop.f32.mrb[0].mxu0
  %303 = vmatprep.mubr.bf16.mxu0 %v224
  %304 = vmatmul.mubr.bf16.gmra.mrb[0].mxu0 %v113
  %v305 = vpop.f32.mrb[0].mxu0
  %v306 = vadd.f32 0.0, %v305
  %v307 = vpop.f32.mrb[0].mxu0
  %v308 = vpop.f32.mrb[0].mxu0
  %v309 = vadd.f32 0.0, %v308
  %v310 = vpop.f32.mrb[0].mxu0
  %311 = vmatprep.mubr.bf16.mxu0 %v227
  %312 = vmatmul.mubr.bf16.gmra.mrb[0].mxu0 %v115
  %v313 = vpop.f32.mrb[0].mxu0
  %v314 = vadd.f32 0.0, %v313
  %v315 = vpop.f32.mrb[0].mxu0
  %v316 = vpop.f32.mrb[0].mxu0
  %v317 = vadd.f32 0.0, %v316
  %v318 = vpop.f32.mrb[0].mxu0
  %319 = vmatprep.mubr.bf16.mxu0 %v230
  %320 = vmatmul.mubr.bf16.gmra.mrb[0].mxu0 %v117
  %v321 = vpop.f32.mrb[0].mxu0
  %v322 = vadd.f32 0.0, %v321
  %v323 = vpop.f32.mrb[0].mxu0
  %v324 = vpop.f32.mrb[0].mxu0
  %v325 = vadd.f32 0.0, %v324
  %v326 = vpop.f32.mrb[0].mxu0
  %327 = vmatprep.mubr.bf16.mxu0 %v233
  %328 = vmatmul.mubr.bf16.gmra.mrb[0].mxu0 %v119
  %v329 = vpop.f32.mrb[0].mxu0
  %v330 = vadd.f32 0.0, %v329
  %v331 = vpop.f32.mrb[0].mxu0
  %v332 = vpop.f32.mrb[0].mxu0
  %v333 = vadd.f32 0.0, %v332
  %v334 = vpop.f32.mrb[0].mxu0
  %335 = vdwg.mxu0
  %v336 = vpack.c.bf16 %v277, %v274
  %v337 = vpack.c.bf16 %v285, %v282
  %v338 = vpack.c.bf16 %v293, %v290
  %v339 = vpack.c.bf16 %v301, %v298
  %v340 = vpack.c.bf16 %v309, %v306
  %v341 = vpack.c.bf16 %v317, %v314
  %v342 = vpack.c.bf16 %v325, %v322
  %v343 = vpack.c.bf16 %v333, %v330
  %v352 = vunpack.c.l.b16 %v336
  %v353 = vunpack.c.h.b16 %v336
  %v354 = vunpack.c.l.b16 %v337
  %v355 = vunpack.c.h.b16 %v337
  %v356 = vunpack.c.l.b16 %v338
  %v357 = vunpack.c.h.b16 %v338
  %v358 = vunpack.c.l.b16 %v339
  %v359 = vunpack.c.h.b16 %v339
  %v360 = vunpack.c.l.b16 %v340
  %v361 = vunpack.c.h.b16 %v340
  %v362 = vunpack.c.l.b16 %v341
  %v363 = vunpack.c.h.b16 %v341
  %v364 = vunpack.c.l.b16 %v342
  %v365 = vunpack.c.h.b16 %v342
  %v366 = vunpack.c.l.b16 %v343
  %v367 = vunpack.c.h.b16 %v343
  %v368 = vpack.c.b16 %v352, %v352
  %v369 = vpack.c.b16 %v353, %v353
  %v370 = vpack.c.b16 %v354, %v354
  %v371 = vpack.c.b16 %v355, %v355
  %v372 = vpack.c.b16 %v356, %v356
  %v373 = vpack.c.b16 %v357, %v357
  %v374 = vpack.c.b16 %v358, %v358
  %v375 = vpack.c.b16 %v359, %v359
  %v376 = vpack.c.b16 %v360, %v360
  %v377 = vpack.c.b16 %v361, %v361
  %v378 = vpack.c.b16 %v362, %v362
  %v379 = vpack.c.b16 %v363, %v363
  %v380 = vpack.c.b16 %v364, %v364
  %v381 = vpack.c.b16 %v365, %v365
  %v382 = vpack.c.b16 %v366, %v366
  %v383 = vpack.c.b16 %v367, %v367
  %400 = vst [vmem:[%s2] sm:$0xf] %v368
  %401 = vst [vmem:[%s2 + $0x4] sm:$0xf] %v369
  %402 = vst [vmem:[%s2 + $0x8] sm:$0xf] %v370
  %403 = vst [vmem:[%s2 + $0xc] sm:$0xf] %v371
  %404 = vst [vmem:[%s2 + $0x10] sm:$0xf] %v372
  %405 = vst [vmem:[%s2 + $0x14] sm:$0xf] %v373
  %406 = vst [vmem:[%s2 + $0x18] sm:$0xf] %v374
  %407 = vst [vmem:[%s2 + $0x1c] sm:$0xf] %v375
  %408 = vst [vmem:[%s2 + $0x20] sm:$0xf] %v376
  %409 = vst [vmem:[%s2 + $0x24] sm:$0xf] %v377
  %410 = vst [vmem:[%s2 + $0x28] sm:$0xf] %v378
  %411 = vst [vmem:[%s2 + $0x2c] sm:$0xf] %v379
  %412 = vst [vmem:[%s2 + $0x30] sm:$0xf] %v380
  %413 = vst [vmem:[%s2 + $0x34] sm:$0xf] %v381
  %414 = vst [vmem:[%s2 + $0x38] sm:$0xf] %v382
  %415 = vst [vmem:[%s2 + $0x3c] sm:$0xf] %v383
  %v416 = vadd.f32 %v274, %v277
  %v417 = vadd.f32 %v416, %v282
  %v418 = vadd.f32 %v417, %v285
  %v419 = vadd.f32 %v418, %v290
  %v420 = vadd.f32 %v419, %v293
  %v421 = vadd.f32 %v420, %v298
  %v422 = vadd.f32 %v421, %v301
  %v423 = vadd.f32 %v422, %v306
  %v424 = vadd.f32 %v423, %v309
  %v425 = vadd.f32 %v424, %v314
  %v426 = vadd.f32 %v425, %v317
  %v427 = vadd.f32 %v426, %v322
  %v428 = vadd.f32 %v427, %v325
  %v429 = vadd.f32 %v428, %v330
  %v430 = vadd.f32 %v429, %v333
  %v431 = vrot.slane %v430, 4
  %v432 = vadd.f32 %v430, %v431
  %v433 = vrot.slane %v432, 2
  %v434 = vadd.f32 %v432, %v433
  %v435 = vrot.slane %v434, 1
  %v436 = vadd.f32 %v434, %v435
  %v437 = vmul.f32 %v274, %v274
  %v438 = vmul.f32 %v277, %v277
  %v439 = vmul.f32 %v282, %v282
  %v440 = vmul.f32 %v285, %v285
  %v441 = vmul.f32 %v290, %v290
  %v442 = vmul.f32 %v293, %v293
  %v443 = vmul.f32 %v298, %v298
  %v444 = vmul.f32 %v301, %v301
  %v445 = vmul.f32 %v306, %v306
  %v446 = vmul.f32 %v309, %v309
  %v447 = vmul.f32 %v314, %v314
  %v448 = vmul.f32 %v317, %v317
  %v449 = vmul.f32 %v322, %v322
  %v450 = vmul.f32 %v325, %v325
  %v451 = vmul.f32 %v330, %v330
  %v452 = vmul.f32 %v333, %v333
  %v453 = vadd.f32 %v437, %v438
  %v454 = vadd.f32 %v453, %v439
  %v455 = vadd.f32 %v454, %v440
  %v456 = vadd.f32 %v455, %v441
  %v457 = vadd.f32 %v456, %v442
  %v458 = vadd.f32 %v457, %v443
  %v459 = vadd.f32 %v458, %v444
  %v460 = vadd.f32 %v459, %v445
  %v461 = vadd.f32 %v460, %v446
  %v462 = vadd.f32 %v461, %v447
  %v463 = vadd.f32 %v462, %v448
  %v464 = vadd.f32 %v463, %v449
  %v465 = vadd.f32 %v464, %v450
  %v466 = vadd.f32 %v465, %v451
  %v467 = vadd.f32 %v466, %v452
  %v468 = vrot.slane %v467, 4
  %v469 = vadd.f32 %v467, %v468
  %v470 = vrot.slane %v469, 2
  %v471 = vadd.f32 %v469, %v470
  %v472 = vrot.slane %v471, 1
  %v473 = vadd.f32 %v471, %v472
  %474 = vst [vmem:[%s3] sm:$0x1] %v436
  %475 = vst [vmem:[%s3 + $0x1] sm:$0x1] %v473
  // Predicated region
  $region10: #{layer_basic_forward.14} parent=0 // pred_check
    _
  $region11: #{layer_basic_forward.14} parent=0 // pred_check_branch
    %477 = sbr.rel (0) target = $region13
  $region12: #{layer_basic_forward.14} parent=0 // pred_region
    _
  $region13: #{layer_basic_forward.14} parent=0 // pred_fallthru
    _
  // Predicated region
  $region14: #{layer_basic_forward.14} parent=0 // pred_check
    _
  $region15: #{layer_basic_forward.14} parent=0 // pred_check_branch
    %479 = sbr.rel (0) target = $region17
  $region16: #{layer_basic_forward.14} parent=0 // pred_region
    _
  $region17: #{layer_basic_forward.14} parent=0 // pred_fallthru
    _
  // Predicated region
  $region18: #{layer_basic_forward.14} parent=0 // pred_check
    _
  $region19: #{layer_basic_forward.14} parent=0 // pred_check_branch
    %481 = sbr.rel (0) target = $region21
  $region20: #{layer_basic_forward.14} parent=0 // pred_region
    _
  $region21: #{layer_basic_forward.14} parent=0 // pred_fallthru
    _
  // Predicated region
  $region22: #{layer_basic_forward.14} parent=0 // pred_check
    _
  $region23: #{layer_basic_forward.14} parent=0 // pred_check_branch
    %483 = sbr.rel (0) target = $region25
  $region24: #{layer_basic_forward.14} parent=0 // pred_region
    _
  $region25: #{layer_basic_forward.14} parent=0 // pred_fallthru
    _

// kernel: layer_basic_forward.10
$region0: #{layer_basic_forward.10}
  #allocation0 [shape = 'u32[]', space=smem, size = 0x4, offset = 0x4, fixed_abs, tag = 'smem constant byte address 0x4 - core index']
  #allocation1 [shape = 'u32[144,128]{1,0:T(1,128)}', space=vmem, size = 0x12000, scoped, tag = 'internal scratch']
  %s0 = inlined_call_operand.vmem [shape: bf16[128,32], index: 0, kind: input, shape index: {}]
  %s1 = inlined_call_operand.vmem [shape: bf16[32,128], index: 1, kind: input, shape index: {}]
  %s2 = inlined_call_operand.vmem [shape: bf16[128,128], index: 2, kind: output, shape index: {0}]
  %s3 = inlined_call_operand.vmem [shape: f32[1,2,128], index: 3, kind: output, shape index: {1}]
  %4 = xla_tuple %s2, %s3
  %s5 = sld [smem:[#allocation0]]
  $region26: #{layer_basic_forward.10} parent=0
    _
  %s7 = ssub.s32 1, %s5
  %s8 = scalar_select 0, %s7, %s5
  // Predicated region
  $region2: #{layer_basic_forward.10} parent=0 // pred_check
    _
  $region3: #{layer_basic_forward.10} parent=0 // pred_check_branch
    %10 = sbr.rel (0) target = $region5
  $region4: #{layer_basic_forward.10} parent=0 // pred_region
    _
  $region5: #{layer_basic_forward.10} parent=0 // pred_fallthru
    _
  // Predicated region
  $region6: #{layer_basic_forward.10} parent=0 // pred_check
    _
  $region7: #{layer_basic_forward.10} parent=0 // pred_check_branch
    %12 = sbr.rel (0) target = $region9
  $region8: #{layer_basic_forward.10} parent=0 // pred_region
    _
  $region9: #{layer_basic_forward.10} parent=0 // pred_fallthru
    _
  %v14 = vld [vmem:[%s0] sm:$0xf]
  %v15 = vld [vmem:[%s0 + $0x4] sm:$0xf]
  %v16 = vld [vmem:[%s0 + $0x8] sm:$0xf]
  %v17 = vld [vmem:[%s0 + $0xc] sm:$0xf]
  %v18 = vld [vmem:[%s0 + $0x10] sm:$0xf]
  %v19 = vld [vmem:[%s0 + $0x14] sm:$0xf]
  %v20 = vld [vmem:[%s0 + $0x18] sm:$0xf]
  %v21 = vld [vmem:[%s0 + $0x1c] sm:$0xf]
  %v22 = vld [vmem:[%s0 + $0x20] sm:$0xf]
  %v23 = vld [vmem:[%s0 + $0x24] sm:$0xf]
  %v24 = vld [vmem:[%s0 + $0x28] sm:$0xf]
  %v25 = vld [vmem:[%s0 + $0x2c] sm:$0xf]
  %v26 = vld [vmem:[%s0 + $0x30] sm:$0xf]
  %v27 = vld [vmem:[%s0 + $0x34] sm:$0xf]
  %v28 = vld [vmem:[%s0 + $0x38] sm:$0xf]
  %v29 = vld [vmem:[%s0 + $0x3c] sm:$0xf]
  %v30 = vld [vmem:[%s1] sm:$0xf]
  %v31 = vld [vmem:[%s1 + $0x4] sm:$0xf]
  %v32 = vld [vmem:[%s1 + $0x8] sm:$0xf]
  %v33 = vld [vmem:[%s1 + $0xc] sm:$0xf]
  %v50 = vunpack.c.l.b16 %v14
  %v51 = vunpack.c.l.b16 %v15
  %v52 = vunpack.c.l.b16 %v16
  %v53 = vunpack.c.l.b16 %v17
  %v54 = vunpack.c.l.b16 %v18
  %v55 = vunpack.c.l.b16 %v19
  %v56 = vunpack.c.l.b16 %v20
  %v57 = vunpack.c.l.b16 %v21
  %v58 = vunpack.c.l.b16 %v22
  %v59 = vunpack.c.l.b16 %v23
  %v60 = vunpack.c.l.b16 %v24
  %v61 = vunpack.c.l.b16 %v25
  %v62 = vunpack.c.l.b16 %v26
  %v63 = vunpack.c.l.b16 %v27
  %v64 = vunpack.c.l.b16 %v28
  %v65 = vunpack.c.l.b16 %v29
  %v66 = vpack.c.b16 %v51, %v50
  %v67 = vpack.c.b16 %v53, %v52
  %v68 = vpack.c.b16 %v55, %v54
  %v69 = vpack.c.b16 %v57, %v56
  %v70 = vpack.c.b16 %v59, %v58
  %v71 = vpack.c.b16 %v61, %v60
  %v72 = vpack.c.b16 %v63, %v62
  %v73 = vpack.c.b16 %v65, %v64
  %v78 = vunpack.c.l.b16 %v30
  %v79 = vunpack.c.l.b16 %v31
  %v80 = vunpack.c.l.b16 %v32
  %v81 = vunpack.c.l.b16 %v33
  %v82 = vpack.c.b16 %v79, %v78
  %v83 = vpack.c.b16 %v81, %v80
  %vm86 = vcmask 261120
  %v88 = vsel %vm86, %v66, 0
  %v91 = vsel %vm86, %v67, 0
  %v94 = vsel %vm86, %v68, 0
  %v97 = vsel %vm86, %v69, 0
  %v100 = vsel %vm86, %v70, 0
  %v103 = vsel %vm86, %v71, 0
  %v106 = vsel %vm86, %v72, 0
  %v109 = vsel %vm86, %v73, 0
  %111 = vmatprep.subr.bf16.mxu0 0
  %112 = vmatpush1.bf16.msra.mxu0 %v82
  %113 = vmatprep.subr.bf16.mxu0 0
  %114 = vmatpush1.bf16.msra.mxu0 %v83
  %115 = vmatprep.subr.bf16.mxu0 0
  %116 = vmatpush1.bf16.msra.mxu0 0
  %117 = vmatprep.subr.bf16.mxu0 0
  %118 = vmatpush1.bf16.msra.mxu0 0
  %119 = vmatprep.subr.bf16.mxu0 0
  %120 = vmatpush1.bf16.msra.mxu0 0
  %121 = vmatprep.subr.bf16.mxu0 0
  %122 = vmatpush1.bf16.msra.mxu0 0
  %123 = vmatprep.subr.bf16.mxu0 0
  %124 = vmatpush1.bf16.msra.mxu0 0
  %125 = vmatprep.subr.bf16.mxu0 0
  %126 = vmatpush1.bf16.msra.mxu0 0
  %127 = vmatprep.subr.bf16.mxu0 0
  %128 = vmatpush1.bf16.msra.mxu0 0
  %129 = vmatprep.subr.bf16.mxu0 0
  %130 = vmatpush1.bf16.msra.mxu0 0
  %131 = vmatprep.subr.bf16.mxu0 0
  %132 = vmatpush1.bf16.msra.mxu0 0
  %133 = vmatprep.subr.bf16.mxu0 0
  %134 = vmatpush1.bf16.msra.mxu0 0
  %135 = vmatprep.subr.bf16.mxu0 0
  %136 = vmatpush1.bf16.msra.mxu0 0
  %137 = vmatprep.subr.bf16.mxu0 0
  %138 = vmatpush1.bf16.msra.mxu0 0
  %139 = vmatprep.subr.bf16.mxu0 0
  %140 = vmatpush1.bf16.msra.mxu0 0
  %141 = vmatprep.subr.bf16.mxu0 0
  %142 = vmatpush1.bf16.msra.mxu0 0
  %143 = vmatprep.mubr.bf16.mxu0 0
  %144 = vmatmul.mubr.bf16.gmra.mrb[0].mxu0 %v88
  %v145 = vpop.f32.mrb[0].mxu0
  %v146 = vadd.f32 0.0, %v145
  %v147 = vpop.f32.mrb[0].mxu0
  %v148 = vpop.f32.mrb[0].mxu0
  %v149 = vadd.f32 0.0, %v148
  %v150 = vpop.f32.mrb[0].mxu0
  %151 = vmatprep.mubr.bf16.mxu0 0
  %152 = vmatmul.mubr.bf16.gmra.mrb[0].mxu0 %v91
  %v153 = vpop.f32.mrb[0].mxu0
  %v154 = vadd.f32 0.0, %v153
  %v155 = vpop.f32.mrb[0].mxu0
  %v156 = vpop.f32.mrb[0].mxu0
  %v157 = vadd.f32 0.0, %v156
  %v158 = vpop.f32.mrb[0].mxu0
  %159 = vmatprep.mubr.bf16.mxu0 0
  %160 = vmatmul.mubr.bf16.gmra.mrb[0].mxu0 %v94
  %v161 = vpop.f32.mrb[0].mxu0
  %v162 = vadd.f32 0.0, %v161
  %v163 = vpop.f32.mrb[0].mxu0
  %v164 = vpop.f32.mrb[0].mxu0
  %v165 = vadd.f32 0.0, %v164
  %v166 = vpop.f32.mrb[0].mxu0
  %167 = vmatprep.mubr.bf16.mxu0 0
  %168 = vmatmul.mubr.bf16.gmra.mrb[0].mxu0 %v97
  %v169 = vpop.f32.mrb[0].mxu0
  %v170 = vadd.f32 0.0, %v169
  %v171 = vpop.f32.mrb[0].mxu0
  %v172 = vpop.f32.mrb[0].mxu0
  %v173 = vadd.f32 0.0, %v172
  %v174 = vpop.f32.mrb[0].mxu0
  %175 = vmatprep.mubr.bf16.mxu0 0
  %176 = vmatmul.mubr.bf16.gmra.mrb[0].mxu0 %v100
  %v177 = vpop.f32.mrb[0].mxu0
  %v178 = vadd.f32 0.0, %v177
  %v179 = vpop.f32.mrb[0].mxu0
  %v180 = vpop.f32.mrb[0].mxu0
  %v181 = vadd.f32 0.0, %v180
  %v182 = vpop.f32.mrb[0].mxu0
  %183 = vmatprep.mubr.bf16.mxu0 0
  %184 = vmatmul.mubr.bf16.gmra.mrb[0].mxu0 %v103
  %v185 = vpop.f32.mrb[0].mxu0
  %v186 = vadd.f32 0.0, %v185
  %v187 = vpop.f32.mrb[0].mxu0
  %v188 = vpop.f32.mrb[0].mxu0
  %v189 = vadd.f32 0.0, %v188
  %v190 = vpop.f32.mrb[0].mxu0
  %191 = vmatprep.mubr.bf16.mxu0 0
  %192 = vmatmul.mubr.bf16.gmra.mrb[0].mxu0 %v106
  %v193 = vpop.f32.mrb[0].mxu0
  %v194 = vadd.f32 0.0, %v193
  %v195 = vpop.f32.mrb[0].mxu0
  %v196 = vpop.f32.mrb[0].mxu0
  %v197 = vadd.f32 0.0, %v196
  %v198 = vpop.f32.mrb[0].mxu0
  %199 = vmatprep.mubr.bf16.mxu0 0
  %200 = vmatmul.mubr.bf16.gmra.mrb[0].mxu0 %v109
  %v201 = vpop.f32.mrb[0].mxu0
  %v202 = vadd.f32 0.0, %v201
  %v203 = vpop.f32.mrb[0].mxu0
  %v204 = vpop.f32.mrb[0].mxu0
  %v205 = vadd.f32 0.0, %v204
  %v206 = vpop.f32.mrb[0].mxu0
  %207 = vdwg.mxu0
  %v208 = vpack.c.bf16 %v149, %v146
  %v209 = vpack.c.bf16 %v157, %v154
  %v210 = vpack.c.bf16 %v165, %v162
  %v211 = vpack.c.bf16 %v173, %v170
  %v212 = vpack.c.bf16 %v181, %v178
  %v213 = vpack.c.bf16 %v189, %v186
  %v214 = vpack.c.bf16 %v197, %v194
  %v215 = vpack.c.bf16 %v205, %v202
  %v224 = vunpack.c.l.b16 %v208
  %v225 = vunpack.c.h.b16 %v208
  %v226 = vunpack.c.l.b16 %v209
  %v227 = vunpack.c.h.b16 %v209
  %v228 = vunpack.c.l.b16 %v210
  %v229 = vunpack.c.h.b16 %v210
  %v230 = vunpack.c.l.b16 %v211
  %v231 = vunpack.c.h.b16 %v211
  %v232 = vunpack.c.l.b16 %v212
  %v233 = vunpack.c.h.b16 %v212
  %v234 = vunpack.c.l.b16 %v213
  %v235 = vunpack.c.h.b16 %v213
  %v236 = vunpack.c.l.b16 %v214
  %v237 = vunpack.c.h.b16 %v214
  %v238 = vunpack.c.l.b16 %v215
  %v239 = vunpack.c.h.b16 %v215
  %v240 = vpack.c.b16 %v224, %v224
  %v241 = vpack.c.b16 %v225, %v225
  %v242 = vpack.c.b16 %v226, %v226
  %v243 = vpack.c.b16 %v227, %v227
  %v244 = vpack.c.b16 %v228, %v228
  %v245 = vpack.c.b16 %v229, %v229
  %v246 = vpack.c.b16 %v230, %v230
  %v247 = vpack.c.b16 %v231, %v231
  %v248 = vpack.c.b16 %v232, %v232
  %v249 = vpack.c.b16 %v233, %v233
  %v250 = vpack.c.b16 %v234, %v234
  %v251 = vpack.c.b16 %v235, %v235
  %v252 = vpack.c.b16 %v236, %v236
  %v253 = vpack.c.b16 %v237, %v237
  %v254 = vpack.c.b16 %v238, %v238
  %v255 = vpack.c.b16 %v239, %v239
  %272 = vst [vmem:[%s2] sm:$0xf] %v240
  %273 = vst [vmem:[%s2 + $0x4] sm:$0xf] %v241
  %274 = vst [vmem:[%s2 + $0x8] sm:$0xf] %v242
  %275 = vst [vmem:[%s2 + $0xc] sm:$0xf] %v243
  %276 = vst [vmem:[%s2 + $0x10] sm:$0xf] %v244
  %277 = vst [vmem:[%s2 + $0x14] sm:$0xf] %v245
  %278 = vst [vmem:[%s2 + $0x18] sm:$0xf] %v246
  %279 = vst [vmem:[%s2 + $0x1c] sm:$0xf] %v247
  %280 = vst [vmem:[%s2 + $0x20] sm:$0xf] %v248
  %281 = vst [vmem:[%s2 + $0x24] sm:$0xf] %v249
  %282 = vst [vmem:[%s2 + $0x28] sm:$0xf] %v250
  %283 = vst [vmem:[%s2 + $0x2c] sm:$0xf] %v251
  %284 = vst [vmem:[%s2 + $0x30] sm:$0xf] %v252
  %285 = vst [vmem:[%s2 + $0x34] sm:$0xf] %v253
  %286 = vst [vmem:[%s2 + $0x38] sm:$0xf] %v254
  %287 = vst [vmem:[%s2 + $0x3c] sm:$0xf] %v255
  %v288 = vadd.f32 %v146, %v149
  %v289 = vadd.f32 %v288, %v154
  %v290 = vadd.f32 %v289, %v157
  %v291 = vadd.f32 %v290, %v162
  %v292 = vadd.f32 %v291, %v165
  %v293 = vadd.f32 %v292, %v170
  %v294 = vadd.f32 %v293, %v173
  %v295 = vadd.f32 %v294, %v178
  %v296 = vadd.f32 %v295, %v181
  %v297 = vadd.f32 %v296, %v186
  %v298 = vadd.f32 %v297, %v189
  %v299 = vadd.f32 %v298, %v194
  %v300 = vadd.f32 %v299, %v197
  %v301 = vadd.f32 %v300, %v202
  %v302 = vadd.f32 %v301, %v205
  %v303 = vrot.slane %v302, 4
  %v304 = vadd.f32 %v302, %v303
  %v305 = vrot.slane %v304, 2
  %v306 = vadd.f32 %v304, %v305
  %v307 = vrot.slane %v306, 1
  %v308 = vadd.f32 %v306, %v307
  %v309 = vmul.f32 %v146, %v146
  %v310 = vmul.f32 %v149, %v149
  %v311 = vmul.f32 %v154, %v154
  %v312 = vmul.f32 %v157, %v157
  %v313 = vmul.f32 %v162, %v162
  %v314 = vmul.f32 %v165, %v165
  %v315 = vmul.f32 %v170, %v170
  %v316 = vmul.f32 %v173, %v173
  %v317 = vmul.f32 %v178, %v178
  %v318 = vmul.f32 %v181, %v181
  %v319 = vmul.f32 %v186, %v186
  %v320 = vmul.f32 %v189, %v189
  %v321 = vmul.f32 %v194, %v194
  %v322 = vmul.f32 %v197, %v197
  %v323 = vmul.f32 %v202, %v202
  %v324 = vmul.f32 %v205, %v205
  %v325 = vadd.f32 %v309, %v310
  %v326 = vadd.f32 %v325, %v311
  %v327 = vadd.f32 %v326, %v312
  %v328 = vadd.f32 %v327, %v313
  %v329 = vadd.f32 %v328, %v314
  %v330 = vadd.f32 %v329, %v315
  %v331 = vadd.f32 %v330, %v316
  %v332 = vadd.f32 %v331, %v317
  %v333 = vadd.f32 %v332, %v318
  %v334 = vadd.f32 %v333, %v319
  %v335 = vadd.f32 %v334, %v320
  %v336 = vadd.f32 %v335, %v321
  %v337 = vadd.f32 %v336, %v322
  %v338 = vadd.f32 %v337, %v323
  %v339 = vadd.f32 %v338, %v324
  %v340 = vrot.slane %v339, 4
  %v341 = vadd.f32 %v339, %v340
  %v342 = vrot.slane %v341, 2
  %v343 = vadd.f32 %v341, %v342
  %v344 = vrot.slane %v343, 1
  %v345 = vadd.f32 %v343, %v344
  %346 = vst [vmem:[%s3] sm:$0x1] %v308
  %347 = vst [vmem:[%s3 + $0x1] sm:$0x1] %v345
  // Predicated region
  $region10: #{layer_basic_forward.10} parent=0 // pred_check
    _
  $region11: #{layer_basic_forward.10} parent=0 // pred_check_branch
    %349 = sbr.rel (0) target = $region13
  $region12: #{layer_basic_forward.10} parent=0 // pred_region
    _
  $region13: #{layer_basic_forward.10} parent=0 // pred_fallthru
    _
  // Predicated region
  $region14: #{layer_basic_forward.10} parent=0 // pred_check
    _
  $region15: #{layer_basic_forward.10} parent=0 // pred_check_branch
    %351 = sbr.rel (0) target = $region17
  $region16: #{layer_basic_forward.10} parent=0 // pred_region
    _
  $region17: #{layer_basic_forward.10} parent=0 // pred_fallthru
    _
  // Predicated region
  $region18: #{layer_basic_forward.10} parent=0 // pred_check
    _
  $region19: #{layer_basic_forward.10} parent=0 // pred_check_branch
    %353 = sbr.rel (0) target = $region21
  $region20: #{layer_basic_forward.10} parent=0 // pred_region
    _
  $region21: #{layer_basic_forward.10} parent=0 // pred_fallthru
    _
  // Predicated region
  $region22: #{layer_basic_forward.10} parent=0 // pred_check
    _
  $region23: #{layer_basic_forward.10} parent=0 // pred_check_branch
    %355 = sbr.rel (0) target = $region25
  $region24: #{layer_basic_forward.10} parent=0 // pred_region
    _
  $region25: #{layer_basic_forward.10} parent=0 // pred_fallthru
    _

// kernel: layer_basic_forward.11
$region0: #{layer_basic_forward.11}
  #allocation0 [shape = 'u32[]', space=smem, size = 0x4, offset = 0x4, fixed_abs, tag = 'smem constant byte address 0x4 - core index']
  #allocation1 [shape = 'u32[144,128]{1,0:T(1,128)}', space=vmem, size = 0x12000, scoped, tag = 'internal scratch']
  %s0 = inlined_call_operand.vmem [shape: bf16[128,128], index: 0, kind: input, shape index: {}]
  %s1 = inlined_call_operand.vmem [shape: f32[1,128], index: 1, kind: input, shape index: {}]
  %s2 = inlined_call_operand.vmem [shape: f32[1,128], index: 2, kind: input, shape index: {}]
  %s3 = inlined_call_operand.vmem [shape: bf16[128,128], index: 3, kind: output, shape index: {}]
  %s4 = sld [smem:[#allocation0]]
  $region22: #{layer_basic_forward.11} parent=0
    _
  %s6 = ssub.s32 1, %s4
  %s7 = scalar_select 0, %s6, %s4
  // Predicated region
  $region2: #{layer_basic_forward.11} parent=0 // pred_check
    _
  $region3: #{layer_basic_forward.11} parent=0 // pred_check_branch
    %9 = sbr.rel (0) target = $region5
  $region4: #{layer_basic_forward.11} parent=0 // pred_region
    _
  $region5: #{layer_basic_forward.11} parent=0 // pred_fallthru
    _
  // Predicated region
  $region6: #{layer_basic_forward.11} parent=0 // pred_check
    _
  $region7: #{layer_basic_forward.11} parent=0 // pred_check_branch
    %11 = sbr.rel (0) target = $region9
  $region8: #{layer_basic_forward.11} parent=0 // pred_region
    _
  $region9: #{layer_basic_forward.11} parent=0 // pred_fallthru
    _
  // Predicated region
  $region10: #{layer_basic_forward.11} parent=0 // pred_check
    _
  $region11: #{layer_basic_forward.11} parent=0 // pred_check_branch
    %13 = sbr.rel (0) target = $region13
  $region12: #{layer_basic_forward.11} parent=0 // pred_region
    _
  $region13: #{layer_basic_forward.11} parent=0 // pred_fallthru
    _
  %v14 = vld [vmem:[%s0] sm:$0xf]
  %v15 = vld [vmem:[%s0 + $0x4] sm:$0xf]
  %v16 = vld [vmem:[%s0 + $0x8] sm:$0xf]
  %v17 = vld [vmem:[%s0 + $0xc] sm:$0xf]
  %v18 = vld [vmem:[%s0 + $0x10] sm:$0xf]
  %v19 = vld [vmem:[%s0 + $0x14] sm:$0xf]
  %v20 = vld [vmem:[%s0 + $0x18] sm:$0xf]
  %v21 = vld [vmem:[%s0 + $0x1c] sm:$0xf]
  %v22 = vld [vmem:[%s0 + $0x20] sm:$0xf]
  %v23 = vld [vmem:[%s0 + $0x24] sm:$0xf]
  %v24 = vld [vmem:[%s0 + $0x28] sm:$0xf]
  %v25 = vld [vmem:[%s0 + $0x2c] sm:$0xf]
  %v26 = vld [vmem:[%s0 + $0x30] sm:$0xf]
  %v27 = vld [vmem:[%s0 + $0x34] sm:$0xf]
  %v28 = vld [vmem:[%s0 + $0x38] sm:$0xf]
  %v29 = vld [vmem:[%s0 + $0x3c] sm:$0xf]
  %v30 = vunpack.c.l.bf16 %v14
  %v31 = vunpack.c.l.bf16 %v15
  %v32 = vunpack.c.l.bf16 %v16
  %v33 = vunpack.c.l.bf16 %v17
  %v34 = vunpack.c.l.bf16 %v18
  %v35 = vunpack.c.l.bf16 %v19
  %v36 = vunpack.c.l.bf16 %v20
  %v37 = vunpack.c.l.bf16 %v21
  %v38 = vunpack.c.l.bf16 %v22
  %v39 = vunpack.c.l.bf16 %v23
  %v40 = vunpack.c.l.bf16 %v24
  %v41 = vunpack.c.l.bf16 %v25
  %v42 = vunpack.c.l.bf16 %v26
  %v43 = vunpack.c.l.bf16 %v27
  %v44 = vunpack.c.l.bf16 %v28
  %v45 = vunpack.c.l.bf16 %v29
  %v46 = vld [vmem:[%s1] sm:$0x1]
  %v48 = vlaneseq
  %v49 = vshrl.u32 %v48, 7
  %v50 = vsub.s32 0, %v49
  %v51 = vrot.slane %v46, %v50
  %v53 = vmul.f32 %v30, %v51
  %v54 = vmul.f32 %v31, %v51
  %v55 = vmul.f32 %v32, %v51
  %v56 = vmul.f32 %v33, %v51
  %v57 = vmul.f32 %v34, %v51
  %v58 = vmul.f32 %v35, %v51
  %v59 = vmul.f32 %v36, %v51
  %v60 = vmul.f32 %v37, %v51
  %v61 = vmul.f32 %v38, %v51
  %v62 = vmul.f32 %v39, %v51
  %v63 = vmul.f32 %v40, %v51
  %v64 = vmul.f32 %v41, %v51
  %v65 = vmul.f32 %v42, %v51
  %v66 = vmul.f32 %v43, %v51
  %v67 = vmul.f32 %v44, %v51
  %v68 = vmul.f32 %v45, %v51
  %v69 = vld [vmem:[%s2] sm:$0x1]
  %v71 = vlaneseq
  %v72 = vshrl.u32 %v71, 7
  %v73 = vsub.s32 0, %v72
  %v74 = vrot.slane %v69, %v73
  %v76 = vadd.f32 %v53, %v74
  %v77 = vadd.f32 %v54, %v74
  %v78 = vadd.f32 %v55, %v74
  %v79 = vadd.f32 %v56, %v74
  %v80 = vadd.f32 %v57, %v74
  %v81 = vadd.f32 %v58, %v74
  %v82 = vadd.f32 %v59, %v74
  %v83 = vadd.f32 %v60, %v74
  %v84 = vadd.f32 %v61, %v74
  %v85 = vadd.f32 %v62, %v74
  %v86 = vadd.f32 %v63, %v74
  %v87 = vadd.f32 %v64, %v74
  %v88 = vadd.f32 %v65, %v74
  %v89 = vadd.f32 %v66, %v74
  %v90 = vadd.f32 %v67, %v74
  %v91 = vadd.f32 %v68, %v74
  %v92 = vpack.c.bf16 %v77, %v76
  %v93 = vpack.c.bf16 %v79, %v78
  %v94 = vpack.c.bf16 %v81, %v80
  %v95 = vpack.c.bf16 %v83, %v82
  %v96 = vpack.c.bf16 %v85, %v84
  %v97 = vpack.c.bf16 %v87, %v86
  %v98 = vpack.c.bf16 %v89, %v88
  %v99 = vpack.c.bf16 %v91, %v90
  %v108 = vunpack.c.l.b16 %v92
  %v109 = vunpack.c.h.b16 %v92
  %v110 = vunpack.c.l.b16 %v93
  %v111 = vunpack.c.h.b16 %v93
  %v112 = vunpack.c.l.b16 %v94
  %v113 = vunpack.c.h.b16 %v94
  %v114 = vunpack.c.l.b16 %v95
  %v115 = vunpack.c.h.b16 %v95
  %v116 = vunpack.c.l.b16 %v96
  %v117 = vunpack.c.h.b16 %v96
  %v118 = vunpack.c.l.b16 %v97
  %v119 = vunpack.c.h.b16 %v97
  %v120 = vunpack.c.l.b16 %v98
  %v121 = vunpack.c.h.b16 %v98
  %v122 = vunpack.c.l.b16 %v99
  %v123 = vunpack.c.h.b16 %v99
  %v124 = vpack.c.b16 %v108, %v108
  %v125 = vpack.c.b16 %v109, %v109
  %v126 = vpack.c.b16 %v110, %v110
  %v127 = vpack.c.b16 %v111, %v111
  %v128 = vpack.c.b16 %v112, %v112
  %v129 = vpack.c.b16 %v113, %v113
  %v130 = vpack.c.b16 %v114, %v114
  %v131 = vpack.c.b16 %v115, %v115
  %v132 = vpack.c.b16 %v116, %v116
  %v133 = vpack.c.b16 %v117, %v117
  %v134 = vpack.c.b16 %v118, %v118
  %v135 = vpack.c.b16 %v119, %v119
  %v136 = vpack.c.b16 %v120, %v120
  %v137 = vpack.c.b16 %v121, %v121
  %v138 = vpack.c.b16 %v122, %v122
  %v139 = vpack.c.b16 %v123, %v123
  %156 = vst [vmem:[%s3] sm:$0xf] %v124
  %157 = vst [vmem:[%s3 + $0x4] sm:$0xf] %v125
  %158 = vst [vmem:[%s3 + $0x8] sm:$0xf] %v126
  %159 = vst [vmem:[%s3 + $0xc] sm:$0xf] %v127
  %160 = vst [vmem:[%s3 + $0x10] sm:$0xf] %v128
  %161 = vst [vmem:[%s3 + $0x14] sm:$0xf] %v129
  %162 = vst [vmem:[%s3 + $0x18] sm:$0xf] %v130
  %163 = vst [vmem:[%s3 + $0x1c] sm:$0xf] %v131
  %164 = vst [vmem:[%s3 + $0x20] sm:$0xf] %v132
  %165 = vst [vmem:[%s3 + $0x24] sm:$0xf] %v133
  %166 = vst [vmem:[%s3 + $0x28] sm:$0xf] %v134
  %167 = vst [vmem:[%s3 + $0x2c] sm:$0xf] %v135
  %168 = vst [vmem:[%s3 + $0x30] sm:$0xf] %v136
  %169 = vst [vmem:[%s3 + $0x34] sm:$0xf] %v137
  %170 = vst [vmem:[%s3 + $0x38] sm:$0xf] %v138
  %171 = vst [vmem:[%s3 + $0x3c] sm:$0xf] %v139
  // Predicated region
  $region14: #{layer_basic_forward.11} parent=0 // pred_check
    _
  $region15: #{layer_basic_forward.11} parent=0 // pred_check_branch
    %173 = sbr.rel (0) target = $region17
  $region16: #{layer_basic_forward.11} parent=0 // pred_region
    _
  $region17: #{layer_basic_forward.11} parent=0 // pred_fallthru
    _
  // Predicated region
  $region18: #{layer_basic_forward.11} parent=0 // pred_check
    _
  $region19: #{layer_basic_forward.11} parent=0 // pred_check_branch
    %175 = sbr.rel (0) target = $region21
  $region20: #{layer_basic_forward.11} parent=0 // pred_region
    _
  $region21: #{layer_basic_forward.11} parent=0 // pred_fallthru
    _

// kernel: layer_basic_forward.15
$region0: #{layer_basic_forward.15}
  #allocation0 [shape = 'u32[]', space=smem, size = 0x4, offset = 0x4, fixed_abs, tag = 'smem constant byte address 0x4 - core index']
  #allocation1 [shape = 'u32[144,128]{1,0:T(1,128)}', space=vmem, size = 0x12000, scoped, tag = 'internal scratch']
  %s0 = inlined_call_operand.vmem [shape: bf16[128,128], index: 0, kind: input, shape index: {}]
  %s1 = inlined_call_operand.vmem [shape: f32[1,128], index: 1, kind: input, shape index: {}]
  %s2 = inlined_call_operand.vmem [shape: f32[1,128], index: 2, kind: input, shape index: {}]
  %s3 = inlined_call_operand.vmem [shape: bf16[128,128], index: 3, kind: input, shape index: {}]
  %s4 = inlined_call_operand.vmem [shape: bf16[128,128], index: 4, kind: output, shape index: {}]
  %s5 = sld [smem:[#allocation0]]
  $region26: #{layer_basic_forward.15} parent=0
    _
  %s7 = ssub.s32 1, %s5
  %s8 = scalar_select 0, %s7, %s5
  // Predicated region
  $region2: #{layer_basic_forward.15} parent=0 // pred_check
    _
  $region3: #{layer_basic_forward.15} parent=0 // pred_check_branch
    %10 = sbr.rel (0) target = $region5
  $region4: #{layer_basic_forward.15} parent=0 // pred_region
    _
  $region5: #{layer_basic_forward.15} parent=0 // pred_fallthru
    _
  // Predicated region
  $region6: #{layer_basic_forward.15} parent=0 // pred_check
    _
  $region7: #{layer_basic_forward.15} parent=0 // pred_check_branch
    %12 = sbr.rel (0) target = $region9
  $region8: #{layer_basic_forward.15} parent=0 // pred_region
    _
  $region9: #{layer_basic_forward.15} parent=0 // pred_fallthru
    _
  // Predicated region
  $region10: #{layer_basic_forward.15} parent=0 // pred_check
    _
  $region11: #{layer_basic_forward.15} parent=0 // pred_check_branch
    %14 = sbr.rel (0) target = $region13
  $region12: #{layer_basic_forward.15} parent=0 // pred_region
    _
  $region13: #{layer_basic_forward.15} parent=0 // pred_fallthru
    _
  // Predicated region
  $region14: #{layer_basic_forward.15} parent=0 // pred_check
    _
  $region15: #{layer_basic_forward.15} parent=0 // pred_check_branch
    %16 = sbr.rel (0) target = $region17
  $region16: #{layer_basic_forward.15} parent=0 // pred_region
    _
  $region17: #{layer_basic_forward.15} parent=0 // pred_fallthru
    _
  %v17 = vld [vmem:[%s0] sm:$0xf]
  %v18 = vld [vmem:[%s0 + $0x4] sm:$0xf]
  %v19 = vld [vmem:[%s0 + $0x8] sm:$0xf]
  %v20 = vld [vmem:[%s0 + $0xc] sm:$0xf]
  %v21 = vld [vmem:[%s0 + $0x10] sm:$0xf]
  %v22 = vld [vmem:[%s0 + $0x14] sm:$0xf]
  %v23 = vld [vmem:[%s0 + $0x18] sm:$0xf]
  %v24 = vld [vmem:[%s0 + $0x1c] sm:$0xf]
  %v25 = vld [vmem:[%s0 + $0x20] sm:$0xf]
  %v26 = vld [vmem:[%s0 + $0x24] sm:$0xf]
  %v27 = vld [vmem:[%s0 + $0x28] sm:$0xf]
  %v28 = vld [vmem:[%s0 + $0x2c] sm:$0xf]
  %v29 = vld [vmem:[%s0 + $0x30] sm:$0xf]
  %v30 = vld [vmem:[%s0 + $0x34] sm:$0xf]
  %v31 = vld [vmem:[%s0 + $0x38] sm:$0xf]
  %v32 = vld [vmem:[%s0 + $0x3c] sm:$0xf]
  %v33 = vunpack.c.l.bf16 %v17
  %v34 = vunpack.c.l.bf16 %v18
  %v35 = vunpack.c.l.bf16 %v19
  %v36 = vunpack.c.l.bf16 %v20
  %v37 = vunpack.c.l.bf16 %v21
  %v38 = vunpack.c.l.bf16 %v22
  %v39 = vunpack.c.l.bf16 %v23
  %v40 = vunpack.c.l.bf16 %v24
  %v41 = vunpack.c.l.bf16 %v25
  %v42 = vunpack.c.l.bf16 %v26
  %v43 = vunpack.c.l.bf16 %v27
  %v44 = vunpack.c.l.bf16 %v28
  %v45 = vunpack.c.l.bf16 %v29
  %v46 = vunpack.c.l.bf16 %v30
  %v47 = vunpack.c.l.bf16 %v31
  %v48 = vunpack.c.l.bf16 %v32
  %v49 = vld [vmem:[%s1] sm:$0x1]
  %v51 = vlaneseq
  %v52 = vshrl.u32 %v51, 7
  %v53 = vsub.s32 0, %v52
  %v54 = vrot.slane %v49, %v53
  %v56 = vmul.f32 %v33, %v54
  %v57 = vmul.f32 %v34, %v54
  %v58 = vmul.f32 %v35, %v54
  %v59 = vmul.f32 %v36, %v54
  %v60 = vmul.f32 %v37, %v54
  %v61 = vmul.f32 %v38, %v54
  %v62 = vmul.f32 %v39, %v54
  %v63 = vmul.f32 %v40, %v54
  %v64 = vmul.f32 %v41, %v54
  %v65 = vmul.f32 %v42, %v54
  %v66 = vmul.f32 %v43, %v54
  %v67 = vmul.f32 %v44, %v54
  %v68 = vmul.f32 %v45, %v54
  %v69 = vmul.f32 %v46, %v54
  %v70 = vmul.f32 %v47, %v54
  %v71 = vmul.f32 %v48, %v54
  %v72 = vld [vmem:[%s2] sm:$0x1]
  %v74 = vlaneseq
  %v75 = vshrl.u32 %v74, 7
  %v76 = vsub.s32 0, %v75
  %v77 = vrot.slane %v72, %v76
  %v79 = vadd.f32 %v56, %v77
  %v80 = vadd.f32 %v57, %v77
  %v81 = vadd.f32 %v58, %v77
  %v82 = vadd.f32 %v59, %v77
  %v83 = vadd.f32 %v60, %v77
  %v84 = vadd.f32 %v61, %v77
  %v85 = vadd.f32 %v62, %v77
  %v86 = vadd.f32 %v63, %v77
  %v87 = vadd.f32 %v64, %v77
  %v88 = vadd.f32 %v65, %v77
  %v89 = vadd.f32 %v66, %v77
  %v90 = vadd.f32 %v67, %v77
  %v91 = vadd.f32 %v68, %v77
  %v92 = vadd.f32 %v69, %v77
  %v93 = vadd.f32 %v70, %v77
  %v94 = vadd.f32 %v71, %v77
  %v95 = vld [vmem:[%s3] sm:$0xf]
  %v96 = vld [vmem:[%s3 + $0x4] sm:$0xf]
  %v97 = vld [vmem:[%s3 + $0x8] sm:$0xf]
  %v98 = vld [vmem:[%s3 + $0xc] sm:$0xf]
  %v99 = vld [vmem:[%s3 + $0x10] sm:$0xf]
  %v100 = vld [vmem:[%s3 + $0x14] sm:$0xf]
  %v101 = vld [vmem:[%s3 + $0x18] sm:$0xf]
  %v102 = vld [vmem:[%s3 + $0x1c] sm:$0xf]
  %v103 = vld [vmem:[%s3 + $0x20] sm:$0xf]
  %v104 = vld [vmem:[%s3 + $0x24] sm:$0xf]
  %v105 = vld [vmem:[%s3 + $0x28] sm:$0xf]
  %v106 = vld [vmem:[%s3 + $0x2c] sm:$0xf]
  %v107 = vld [vmem:[%s3 + $0x30] sm:$0xf]
  %v108 = vld [vmem:[%s3 + $0x34] sm:$0xf]
  %v109 = vld [vmem:[%s3 + $0x38] sm:$0xf]
  %v110 = vld [vmem:[%s3 + $0x3c] sm:$0xf]
  %v111 = vunpack.c.l.bf16 %v95
  %v112 = vunpack.c.l.bf16 %v96
  %v113 = vunpack.c.l.bf16 %v97
  %v114 = vunpack.c.l.bf16 %v98
  %v115 = vunpack.c.l.bf16 %v99
  %v116 = vunpack.c.l.bf16 %v100
  %v117 = vunpack.c.l.bf16 %v101
  %v118 = vunpack.c.l.bf16 %v102
  %v119 = vunpack.c.l.bf16 %v103
  %v120 = vunpack.c.l.bf16 %v104
  %v121 = vunpack.c.l.bf16 %v105
  %v122 = vunpack.c.l.bf16 %v106
  %v123 = vunpack.c.l.bf16 %v107
  %v124 = vunpack.c.l.bf16 %v108
  %v125 = vunpack.c.l.bf16 %v109
  %v126 = vunpack.c.l.bf16 %v110
  %v127 = vadd.f32 %v79, %v111
  %v128 = vadd.f32 %v80, %v112
  %v129 = vadd.f32 %v81, %v113
  %v130 = vadd.f32 %v82, %v114
  %v131 = vadd.f32 %v83, %v115
  %v132 = vadd.f32 %v84, %v116
  %v133 = vadd.f32 %v85, %v117
  %v134 = vadd.f32 %v86, %v118
  %v135 = vadd.f32 %v87, %v119
  %v136 = vadd.f32 %v88, %v120
  %v137 = vadd.f32 %v89, %v121
  %v138 = vadd.f32 %v90, %v122
  %v139 = vadd.f32 %v91, %v123
  %v140 = vadd.f32 %v92, %v124
  %v141 = vadd.f32 %v93, %v125
  %v142 = vadd.f32 %v94, %v126
  %v143 = vmax.f32 %v127, 0.0
  %v144 = vmax.f32 %v128, 0.0
  %v145 = vmax.f32 %v129, 0.0
  %v146 = vmax.f32 %v130, 0.0
  %v147 = vmax.f32 %v131, 0.0
  %v148 = vmax.f32 %v132, 0.0
  %v149 = vmax.f32 %v133, 0.0
  %v150 = vmax.f32 %v134, 0.0
  %v151 = vmax.f32 %v135, 0.0
  %v152 = vmax.f32 %v136, 0.0
  %v153 = vmax.f32 %v137, 0.0
  %v154 = vmax.f32 %v138, 0.0
  %v155 = vmax.f32 %v139, 0.0
  %v156 = vmax.f32 %v140, 0.0
  %v157 = vmax.f32 %v141, 0.0
  %v158 = vmax.f32 %v142, 0.0
  %v159 = vpack.c.bf16 %v144, %v143
  %v160 = vpack.c.bf16 %v146, %v145
  %v161 = vpack.c.bf16 %v148, %v147
  %v162 = vpack.c.bf16 %v150, %v149
  %v163 = vpack.c.bf16 %v152, %v151
  %v164 = vpack.c.bf16 %v154, %v153
  %v165 = vpack.c.bf16 %v156, %v155
  %v166 = vpack.c.bf16 %v158, %v157
  %v175 = vunpack.c.l.b16 %v159
  %v176 = vunpack.c.h.b16 %v159
  %v177 = vunpack.c.l.b16 %v160
  %v178 = vunpack.c.h.b16 %v160
  %v179 = vunpack.c.l.b16 %v161
  %v180 = vunpack.c.h.b16 %v161
  %v181 = vunpack.c.l.b16 %v162
  %v182 = vunpack.c.h.b16 %v162
  %v183 = vunpack.c.l.b16 %v163
  %v184 = vunpack.c.h.b16 %v163
  %v185 = vunpack.c.l.b16 %v164
  %v186 = vunpack.c.h.b16 %v164
  %v187 = vunpack.c.l.b16 %v165
  %v188 = vunpack.c.h.b16 %v165
  %v189 = vunpack.c.l.b16 %v166
  %v190 = vunpack.c.h.b16 %v166
  %v191 = vpack.c.b16 %v175, %v175
  %v192 = vpack.c.b16 %v176, %v176
  %v193 = vpack.c.b16 %v177, %v177
  %v194 = vpack.c.b16 %v178, %v178
  %v195 = vpack.c.b16 %v179, %v179
  %v196 = vpack.c.b16 %v180, %v180
  %v197 = vpack.c.b16 %v181, %v181
  %v198 = vpack.c.b16 %v182, %v182
  %v199 = vpack.c.b16 %v183, %v183
  %v200 = vpack.c.b16 %v184, %v184
  %v201 = vpack.c.b16 %v185, %v185
  %v202 = vpack.c.b16 %v186, %v186
  %v203 = vpack.c.b16 %v187, %v187
  %v204 = vpack.c.b16 %v188, %v188
  %v205 = vpack.c.b16 %v189, %v189
  %v206 = vpack.c.b16 %v190, %v190
  %223 = vst [vmem:[%s4] sm:$0xf] %v191
  %224 = vst [vmem:[%s4 + $0x4] sm:$0xf] %v192
  %225 = vst [vmem:[%s4 + $0x8] sm:$0xf] %v193
  %226 = vst [vmem:[%s4 + $0xc] sm:$0xf] %v194
  %227 = vst [vmem:[%s4 + $0x10] sm:$0xf] %v195
  %228 = vst [vmem:[%s4 + $0x14] sm:$0xf] %v196
  %229 = vst [vmem:[%s4 + $0x18] sm:$0xf] %v197
  %230 = vst [vmem:[%s4 + $0x1c] sm:$0xf] %v198
  %231 = vst [vmem:[%s4 + $0x20] sm:$0xf] %v199
  %232 = vst [vmem:[%s4 + $0x24] sm:$0xf] %v200
  %233 = vst [vmem:[%s4 + $0x28] sm:$0xf] %v201
  %234 = vst [vmem:[%s4 + $0x2c] sm:$0xf] %v202
  %235 = vst [vmem:[%s4 + $0x30] sm:$0xf] %v203
  %236 = vst [vmem:[%s4 + $0x34] sm:$0xf] %v204
  %237 = vst [vmem:[%s4 + $0x38] sm:$0xf] %v205
  %238 = vst [vmem:[%s4 + $0x3c] sm:$0xf] %v206
  // Predicated region
  $region18: #{layer_basic_forward.15} parent=0 // pred_check
    _
  $region19: #{layer_basic_forward.15} parent=0 // pred_check_branch
    %240 = sbr.rel (0) target = $region21
  $region20: #{layer_basic_forward.15} parent=0 // pred_region
    _
  $region21: #{layer_basic_forward.15} parent=0 // pred_fallthru
    _
  // Predicated region
  $region22: #{layer_basic_forward.15} parent=0 // pred_check
    _
  $region23: #{layer_basic_forward.15} parent=0 // pred_check_branch
    %242 = sbr.rel (0) target = $region25
  $region24: #{layer_basic_forward.15} parent=0 // pred_region
    _
  $region25: #{layer_basic_forward.15} parent=0 // pred_fallthru
    _

</llo_original>
